<compile_context>
chip_gen: v6e
topology: v6e:2x2x1
jax: 0.10.0
libtpu: 0.0.40
codegen_flags: <defaults>
</compile_context>

<pallas_src>
import jax
import jax.numpy as jnp
from jax import lax
from jax.experimental import pallas as pl
from jax.experimental.pallas import tpu as pltpu


# ----------------------------------------------------------------------------
# Pallas kernel: one MXU matmul per batch tile.
# ----------------------------------------------------------------------------
def _matmul_kernel(x_ref, m_ref, o_ref):
    # x_ref : VMEM f32[TN, HW]   flattened image tile
    # m_ref : VMEM f32[HW, HW]   precomposed L-layer operator (transposed)
    # o_ref : VMEM f32[TN, HW]   horizontal-stack output tile
    o_ref[...] = jnp.dot(
        x_ref[...], m_ref[...],
        preferred_element_type=jnp.float32,
        precision=lax.Precision.HIGHEST,
    ).astype(o_ref.dtype)


def _pick_batch_tile(n, n_pix, itemsize, max_tile_bytes=2 << 20):
    """Largest sublane-aligned (multiple of 8) batch tile that divides N and
    fits a modest byte cap; prefers >= 2 grid steps so v7x's second
    TensorCore gets work.  Falls back to a single full-extent block for
    small / odd batches (legal: block == full array dims)."""
    cands = [tn for tn in range(8, n + 1, 8)
             if n % tn == 0 and tn * n_pix * itemsize <= max_tile_bytes]
    if not cands:
        return n
    multi = [tn for tn in cands if n // tn >= 2]
    return max(multi) if multi else max(cands)


# ----------------------------------------------------------------------------
# Precompose the L masked-conv layers into one (H*W, H*W) linear operator.
# This is parameter setup (analogous to the module's in-place weight masking)
# and is amortized over the batch; the per-sample forward is the Pallas matmul.
# ----------------------------------------------------------------------------
def _compose_operator(params, h, w):
    """Returns M such that hx_out_flat = x_flat @ M (row-major pixel order)."""
    f32 = jnp.float32
    hp = lax.Precision.HIGHEST
    mm = lambda a, b: jnp.matmul(a, b, precision=hp)

    i_h = jnp.eye(h, dtype=f32)
    i_w = jnp.eye(w, dtype=f32)
    r_dn = jnp.eye(h, k=-1, dtype=f32)   # (r_dn v)[i] = v[i-1]  (zero pad)
    r_up = jnp.eye(h, k=1, dtype=f32)    # (r_up v)[i] = v[i+1]
    c_lf = jnp.eye(w, k=-1, dtype=f32)   # (c_lf v)[j] = v[j-1]
    c_rt = jnp.eye(w, k=1, dtype=f32)    # (c_rt v)[j] = v[j+1]
    row_ops = (r_dn, i_h, r_up)          # conv row tap ki -> in[i + ki - 1]
    col_ops = (c_lf, i_w, c_rt)          # conv col tap kj -> in[j + kj - 1]

    n_pix = h * w
    d_op = jnp.kron(r_dn, i_w)           # down_shift: out[i, :] = in[i-1, :]
    v_tot = jnp.eye(n_pix, dtype=f32)    # vx = V_tot @ x_flat
    h_tot = jnp.eye(n_pix, dtype=f32)    # hx = H_tot @ x_flat  (vx = hx = x at entry)

    for (vw, hw_w, vhw, vmask, hmask) in params:
        vwm = vw * vmask                 # masked (3,3) vertical taps
        hwm = hw_w * hmask               # masked (1,3) horizontal taps
        # Masked 3x3 vertical conv (cross-correlation, padding=1) as a matrix.
        a_v = sum(jnp.kron(row_ops[ki],
                           sum(vwm[ki, kj] * col_ops[kj] for kj in range(3)))
                  for ki in range(3))
        # Masked 1x3 horizontal conv (padding=(0,1)).
        a_h = jnp.kron(i_h, sum(hwm[0, kj] * col_ops[kj] for kj in range(3)))

        v_new = mm(a_v, v_tot)                                   # vx' = Av vx
        h_tot = mm(a_h, h_tot) + vhw.reshape(()) * mm(d_op, v_new)  # hx' = Ah hx + c*D vx'
        v_tot = v_new

    return h_tot.T                       # out_flat = x_flat @ M


# ----------------------------------------------------------------------------
# Forward wrapper.
# ----------------------------------------------------------------------------
@jax.jit
def pixelcnn_forward_pallas(x, params):
    """x: (N, 1, H, W) float32 -> (N, 1, H, W) float32 (horizontal stack)."""
    n, c, h, w = x.shape
    assert c == 1
    n_pix = h * w

    m = _compose_operator(params, h, w)          # (H*W, H*W)
    x_flat = x.reshape(n, n_pix)                 # free reshape, contiguous

    tn = _pick_batch_tile(n, n_pix, x.dtype.itemsize)
    grid = (n // tn,)

    out_flat = pl.pallas_call(
        _matmul_kernel,
        grid=grid,
        in_specs=[pl.BlockSpec((tn, n_pix), lambda i: (i, 0)),
                  pl.BlockSpec((n_pix, n_pix), lambda i: (0, 0))],
        out_specs=pl.BlockSpec((tn, n_pix), lambda i: (i, 0)),
        out_shape=jax.ShapeDtypeStruct((n, n_pix), x.dtype),
        compiler_params=pltpu.CompilerParams(
            dimension_semantics=("parallel",)),
    )(x_flat, m)

    return out_flat.reshape(n, 1, h, w)          # free reshape


# ----------------------------------------------------------------------------
# Deterministic parameters + pure-JAX (lax.conv) reference for validation.
# ----------------------------------------------------------------------------
def make_params(n_layers, key):
    """Weights + PixelCNN masks per layer (shapes from the module __init__)."""
    assert n_layers >= 2
    params = []
    for layer in range(n_layers):
        key, k1, k2, k3 = jax.random.split(key, 4)
        vw = jax.random.normal(k1, (3, 3), jnp.float32) * 0.5   # vertical.weight (1,1,3,3)
        hw = jax.random.normal(k2, (1, 3), jnp.float32) * 0.5   # horizontal.weight (1,1,1,3)
        vhw = jax.random.normal(k3, (1, 1), jnp.float32) * 0.5  # vtohori.weight (1,1,1,1)
        vmask = jnp.ones((3, 3), jnp.float32).at[2:, :].set(0.0)  # keep rows 0,1
        hmask = jnp.ones((1, 3), jnp.float32).at[:, 2:].set(0.0)  # keep cols 0,1
        if layer == 0:  # mask type 'A' for the first layer
            hmask = hmask.at[:, 1].set(0.0)
        params.append((vw, hw, vhw, vmask, hmask))
    return params


def pixelcnn_forward_reference(x, params):
    """Direct per-layer lax.conv reference with identical semantics."""
    vx = x
    hx = x
    dn = ("NCHW", "OIHW", "NCHW")
    hp = lax.Precision.HIGHEST
    for (vw, hw, vhw, vmask, hmask) in params:
        vwm = (vw * vmask)[None, None]   # (1,1,3,3)
        hwm = (hw * hmask)[None, None]   # (1,1,1,3)
        vx = lax.conv_general_dilated(vx, vwm, (1, 1), [(1, 1), (1, 1)],
                                      dimension_numbers=dn, precision=hp)
        hx_c = lax.conv_general_dilated(hx, hwm, (1, 1), [(0, 0), (1, 1)],
                                        dimension_numbers=dn, precision=hp)
        ds = jnp.pad(vx[:, :, :-1, :], ((0, 0), (0, 0), (1, 0), (0, 0)))
        hx = hx_c + vhw[0, 0] * ds
    return hx


if __name__ == "__main__":
    key = jax.random.PRNGKey(0)
    key, kx, kp = jax.random.split(key, 3)

    n_layers = 4
    n, c, h, w = 16, 1, 16, 16   # H*W = 256 -> lane-dense 256-wide MXU tiles
    x = jax.random.normal(kx, (n, c, h, w), jnp.float32)
    params = make_params(n_layers, kp)

    out = jax.block_until_ready(pixelcnn_forward_pallas(x, params))
    ref = jax.block_until_ready(pixelcnn_forward_reference(x, params))

    assert out.shape == (n, 1, h, w)
    rel_err = jnp.max(jnp.abs(out - ref)) / jnp.maximum(1.0, jnp.max(jnp.abs(ref)))
    assert rel_err < 1e-4, f"Pallas output does not match reference (rel_err={rel_err})"

    print("KERNEL_OK")
</pallas_src>

<mosaic_0001>
module attributes {stable_mosaic.version = 11 : i64} {
  func.func @_matmul_kernel(%arg0: i32, %arg1: memref<8x256xf32, #tpu.memory_space<vmem>>, %arg2: memref<256x256xf32, #tpu.memory_space<vmem>>, %arg3: memref<8x256xf32, #tpu.memory_space<vmem>>) attributes {dimension_semantics = [#tpu.dimension_semantics<parallel>], iteration_bounds = array<i64: 2>, scalar_prefetch = 0 : i64, scratch_operands = 0 : i64, tpu.core_type = #tpu.core_type<tc>, window_params = [{transform_indices = @transform_0, window_bounds = array<i64: 8, 256>}, {pipeline_mode = #tpu.pipeline_mode<synchronous>, transform_indices = @transform_1, window_bounds = array<i64: 256, 256>}, {transform_indices = @transform_2, window_bounds = array<i64: 8, 256>}]} {
    %c0 = arith.constant 0 : index
    %c0_0 = arith.constant 0 : index
    %0 = vector.load %arg1[%c0, %c0_0] : memref<8x256xf32, #tpu.memory_space<vmem>>, vector<8x256xf32>
    %c0_1 = arith.constant 0 : index
    %c0_2 = arith.constant 0 : index
    %1 = vector.load %arg2[%c0_1, %c0_2] : memref<256x256xf32, #tpu.memory_space<vmem>>, vector<256x256xf32>
    %cst = arith.constant dense<0.000000e+00> : vector<8x256xf32>
    %2 = tpu.matmul %0, %1, %cst {dimension_numbers = #tpu.dot_dimension_numbers<[1], [0], [0], [1], [0, 0, 1, 1], [], []>, precision = #tpu.contract_precision<fp32>} : vector<8x256xf32>, vector<256x256xf32>, vector<8x256xf32> -> vector<8x256xf32>
    %c0_3 = arith.constant 0 : index
    %c0_4 = arith.constant 0 : index
    %3 = vector.load %arg3[%c0_3, %c0_4] : memref<8x256xf32, #tpu.memory_space<vmem>>, vector<8x256xf32>
    tpu.vector_store %arg3[%c0_3, %c0_4], %2 {strides = array<i32>} : memref<8x256xf32, #tpu.memory_space<vmem>>, vector<8x256xf32>,
    return
  }
  func.func @transform_0(%arg0: i32) -> (i32, i32) {
    %c0_i32 = arith.constant 0 : i32
    %c0_i32_0 = arith.constant 0 : i32
    return %arg0, %c0_i32 : i32, i32
  }
  func.func @transform_1(%arg0: i32) -> (i32, i32) {
    %c0_i32 = arith.constant 0 : i32
    %c0_i32_0 = arith.constant 0 : i32
    %c0_i32_1 = arith.constant 0 : i32
    return %c0_i32, %c0_i32_0 : i32, i32
  }
  func.func @transform_2(%arg0: i32) -> (i32, i32) {
    %c0_i32 = arith.constant 0 : i32
    %c0_i32_0 = arith.constant 0 : i32
    return %arg0, %c0_i32 : i32, i32
  }
}

</mosaic_0001>

<llo_original>
// kernel: mul.154
$region0: #{mul.154}
  #allocation4 [shape = 's32[1]{0}', space=sflag, size = 0x4, scoped, tag = 'scoped memory for mul.154']
  %s0 = inlined_call_operand.hbm [shape: f32[3,3], index: 0, kind: input, shape index: {}]
  %s1 = inlined_call_operand.hbm [shape: f32[3,3], index: 1, kind: input, shape index: {}]
  %s2 = inlined_call_operand.vmem [shape: f32[3,3], index: 2, kind: output, shape index: {}]
  $region1: #{mul.154} parent=0
    #allocation0 [shape = 'u8[2048]{0}', space=vmem, size = 0x800, scoped, tag = 'operand span for operand 0']
    #allocation1 [shape = 's32[1]{0}', space=sflag, size = 0x4, scoped, tag = 'scoped memory for mul.154']
    #allocation2 [shape = 'u8[2048]{0}', space=vmem, size = 0x800, scoped, tag = 'operand span for operand 1']
    #allocation3 [shape = 's32[1]{0}', space=sflag, size = 0x4, scoped, tag = 'scoped memory for mul.154']
    %3 = vsyncpa [#allocation1], 0
    %4 = vsyncpa [#allocation3], 0
    %s6 = ssub.s32 64, 64
    %7 = vsyncadd [#allocation1], %s6
    %s9 = sshll.u32 [#allocation0], 4
    %s10 = int_to_ptr.vmem [resolvable:$true] %s9
    %12 = dma.hbm_to_vmem [thread:$0]  %s0, 64, %s10, [#allocation1]
    %s14 = ssub.s32 64, 64
    %15 = vsyncadd [#allocation3], %s14
    %s17 = sshll.u32 [#allocation2], 4
    %s18 = int_to_ptr.vmem [resolvable:$true] %s17
    %20 = dma.hbm_to_vmem [thread:$0]  %s1, 64, %s18, [#allocation3]
    %21 = dma.done [#allocation1], 64
    %22 = dma.done [#allocation3], 64
    %v23 = vld [vmem:[#allocation0] sm:$0x7]
    %v24 = vld [vmem:[#allocation2] sm:$0x7]
    %25 = xla_tuple %v23, %v24
    %26 = xla_tuple %25
    %v27 = vmul.f32 %v23, %v24
    %28 = xla_tuple %v27
    %29 = vst [vmem:[%s2] sm:$0xf] %v27
    %30 = vsyncpa [#allocation1], 1
    %31 = vsyncpa [#allocation3], 1

// kernel: mul.211
$region0: #{mul.211}
  #allocation4 [shape = 's32[1]{0}', space=sflag, size = 0x4, scoped, tag = 'scoped memory for mul.211']
  %s0 = inlined_call_operand.hbm [shape: f32[1,3], index: 0, kind: input, shape index: {}]
  %s1 = inlined_call_operand.hbm [shape: f32[1,3], index: 1, kind: input, shape index: {}]
  %s2 = inlined_call_operand.vmem [shape: f32[1,3], index: 2, kind: output, shape index: {}]
  $region1: #{mul.211} parent=0
    #allocation0 [shape = 'u8[512]{0}', space=vmem, size = 0x400, scoped, tag = 'operand span for operand 0']
    #allocation1 [shape = 's32[1]{0}', space=sflag, size = 0x4, scoped, tag = 'scoped memory for mul.211']
    #allocation2 [shape = 'u8[512]{0}', space=vmem, size = 0x400, scoped, tag = 'operand span for operand 1']
    #allocation3 [shape = 's32[1]{0}', space=sflag, size = 0x4, scoped, tag = 'scoped memory for mul.211']
    %3 = vsyncpa [#allocation1], 0
    %4 = vsyncpa [#allocation3], 0
    %s6 = ssub.s32 16, 16
    %7 = vsyncadd [#allocation1], %s6
    %s9 = sshll.u32 [#allocation0], 4
    %s10 = int_to_ptr.vmem [resolvable:$true] %s9
    %12 = dma.hbm_to_vmem [thread:$0]  %s0, 16, %s10, [#allocation1]
    %s14 = ssub.s32 16, 16
    %15 = vsyncadd [#allocation3], %s14
    %s17 = sshll.u32 [#allocation2], 4
    %s18 = int_to_ptr.vmem [resolvable:$true] %s17
    %20 = dma.hbm_to_vmem [thread:$0]  %s1, 16, %s18, [#allocation3]
    %21 = dma.done [#allocation1], 16
    %22 = dma.done [#allocation3], 16
    %v23 = vld [vmem:[#allocation0] sm:$0x1]
    %v24 = vld [vmem:[#allocation2] sm:$0x1]
    %25 = xla_tuple %v23, %v24
    %26 = xla_tuple %25
    %v27 = vmul.f32 %v23, %v24
    %28 = xla_tuple %v27
    %29 = vst [vmem:[%s2] sm:$0x1] %v27
    %30 = vsyncpa [#allocation1], 1
    %31 = vsyncpa [#allocation3], 1

// kernel: pixelcnn_forward_pallas.1
$region0: #{pixelcnn_forward_pallas.1}
  #allocation0 [shape = 'u32[]', space=smem, size = 0x4, offset = 0x4, fixed_abs, tag = 'smem constant byte address 0x4 - core index']
  #allocation1 [shape = 'u32[144,128]{1,0:T(1,128)}', space=vmem, size = 0x12000, scoped, tag = 'internal scratch']
  %s0 = inlined_call_operand.vmem [shape: f32[16,256], index: 0, kind: input, shape index: {}]
  %s1 = inlined_call_operand.vmem [shape: f32[256,256], index: 1, kind: input, shape index: {}]
  %s2 = inlined_call_operand.vmem [shape: f32[16,256], index: 2, kind: output, shape index: {}]
  %s3 = sld [smem:[#allocation0]]
  $region41: #{pixelcnn_forward_pallas.1} parent=0
    _
  %s5 = ssub.s32 1, %s3
  %s6 = scalar_select 0, %s5, %s3
  loop: start=0, step=1, limit=4
  $region2: #{pixelcnn_forward_pallas.1} parent=0 // loop_pre_header
    _
  $region3: #{pixelcnn_forward_pallas.1} parent=0 // loop_header
    %s8 = sphi 0, %s12
    %p9 = scmp.ge.s32.totalorder %s8, 4
    %s18 = sphi 0, %s20
    %s21 = sphi 0, %s18
    %s22 = sphi 0, %s21
    %s38 = sphi 0, %s22
    %s42 = sphi 0, %s42
    %s44 = sphi 0, %s42
    %s45 = sphi 0, %s44
    %s59 = sphi 0, %s45
    %s65 = sphi 0, %s67
    %s68 = sphi 0, %s65
    %s69 = sphi 0, %s68
    %s85 = sphi 0, %s69
  $region4: #{pixelcnn_forward_pallas.1} parent=0 // loop_header_branch
    %11 = sbr.rel (%p9) target = $region8
  $region5: #{pixelcnn_forward_pallas.1} parent=0 // loop_body
    %s13 = ssub.s32 %s8, 1
    %s14 = ssub.s32 %s8, 2
    %s15 = sadd.s32 %s8, 1
    %s16 = ssub.s32 %s8, %s15
    %p17 = scmp.eq.s32.totalorder %s16, 0
    %s19 = sadd.s32 %s18, 1
    %s20 = scalar_select %p17, %s18, %s19
    %p23 = pneg %p17
    %p24 = scmp.eq.s32.totalorder %s8, 1
    %p25 = por %p23, %p24
    %p26 = scmp.ne.s32.totalorder %s18, %s21
    %p27 = scmp.eq.s32.totalorder %s8, 0
    %p28 = por %p26, %p27
    %p29 = scmp.ne.s32.totalorder %s18, %s21
    %p30 = scmp.eq.s32.totalorder %s13, 1
    %p31 = por %p29, %p30
    %p32 = scmp.ne.s32.totalorder %s21, %s22
    %p33 = scmp.eq.s32.totalorder %s13, 0
    %p34 = por %p32, %p33
    %p35 = scmp.ne.s32.totalorder %s21, %s22
    %p36 = scmp.eq.s32.totalorder %s14, 1
    %p37 = por %p35, %p36
    %p39 = scmp.ne.s32.totalorder %s22, %s38
    %p40 = scmp.eq.s32.totalorder %s14, 0
    %p41 = por %p39, %p40
    %s43 = sadd.s32 %s42, 1
    %p46 = scmp.eq.s32.totalorder %s8, 1
    %p47 = scmp.ne.s32.totalorder %s42, %s44
    %p48 = scmp.eq.s32.totalorder %s8, 0
    %p49 = por %p47, %p48
    %p50 = scmp.ne.s32.totalorder %s42, %s44
    %p51 = scmp.eq.s32.totalorder %s13, 1
    %p52 = por %p50, %p51
    %p53 = scmp.ne.s32.totalorder %s44, %s45
    %p54 = scmp.eq.s32.totalorder %s13, 0
    %p55 = por %p53, %p54
    %p56 = scmp.ne.s32.totalorder %s44, %s45
    %p57 = scmp.eq.s32.totalorder %s14, 1
    %p58 = por %p56, %p57
    %p60 = scmp.ne.s32.totalorder %s45, %s59
    %p61 = scmp.eq.s32.totalorder %s14, 0
    %p62 = por %p60, %p61
    %s63 = ssub.s32 %s8, %s15
    %p64 = scmp.eq.s32.totalorder %s63, 0
    %s66 = sadd.s32 %s65, 1
    %s67 = scalar_select %p64, %s65, %s66
    %p70 = pneg %p64
    %p71 = scmp.eq.s32.totalorder %s8, 1
    %p72 = por %p70, %p71
    %p73 = scmp.ne.s32.totalorder %s65, %s68
    %p74 = scmp.eq.s32.totalorder %s8, 0
    %p75 = por %p73, %p74
    %p76 = scmp.ne.s32.totalorder %s65, %s68
    %p77 = scmp.eq.s32.totalorder %s13, 1
    %p78 = por %p76, %p77
    %p79 = scmp.ne.s32.totalorder %s68, %s69
    %p80 = scmp.eq.s32.totalorder %s13, 0
    %p81 = por %p79, %p80
    %p82 = scmp.ne.s32.totalorder %s68, %s69
    %p83 = scmp.eq.s32.totalorder %s14, 1
    %p84 = por %p82, %p83
    %p86 = scmp.ne.s32.totalorder %s69, %s85
    %p87 = scmp.eq.s32.totalorder %s14, 0
    %p88 = por %p86, %p87
    %p89 = scmp.le.s32.totalorder 1, %s8
    %p90 = scmp.lt.s32.totalorder %s8, 3
    %p91 = pnand %p89, %p90
    %p92 = pneg %p91
    // Predicated region
    $region9: #{pixelcnn_forward_pallas.1} parent=5 // pred_check
      _
    $region10: #{pixelcnn_forward_pallas.1} parent=5 // pred_check_branch
      %94 = sbr.rel (%p91) target = $region12
    $region11: #{pixelcnn_forward_pallas.1} parent=5 // pred_region
      %s95 = ssub.s32 %s8, 1
      // Predicated region
      $region13: #{pixelcnn_forward_pallas.1} parent=11 // pred_check
        %p96 = pneg %p55
      $region14: #{pixelcnn_forward_pallas.1} parent=11 // pred_check_branch
        %98 = sbr.rel (%p96) target = $region16
      $region15: #{pixelcnn_forward_pallas.1} parent=11 // pred_region
        _
      $region16: #{pixelcnn_forward_pallas.1} parent=11 // pred_fallthru
        _
    $region12: #{pixelcnn_forward_pallas.1} parent=5 // pred_fallthru
      _
    %p99 = scmp.lt.s32.totalorder %s8, 2
    // Predicated region
    $region17: #{pixelcnn_forward_pallas.1} parent=5 // pred_check
      %p100 = pneg %p99
    $region18: #{pixelcnn_forward_pallas.1} parent=5 // pred_check_branch
      %102 = sbr.rel (%p100) target = $region20
    $region19: #{pixelcnn_forward_pallas.1} parent=5 // pred_region
      // Predicated region
      $region21: #{pixelcnn_forward_pallas.1} parent=19 // pred_check
        %p103 = pneg %p28
      $region22: #{pixelcnn_forward_pallas.1} parent=19 // pred_check_branch
        %105 = sbr.rel (%p103) target = $region24
      $region23: #{pixelcnn_forward_pallas.1} parent=19 // pred_region
        %p106 = scmp.lt.s32.totalorder %s8, 1
        %s107 = scalar_select %p106, %s8, 1
        %s108 = smul.addr %s107, 2
        %s109 = smul.addr %s108, 8
        %s110 = scalar_lea.vmem %s0, %s109
      $region24: #{pixelcnn_forward_pallas.1} parent=19 // pred_fallthru
        _
    $region20: #{pixelcnn_forward_pallas.1} parent=5 // pred_fallthru
      _
    %p111 = scmp.le.s32.totalorder 1, %s8
    %p112 = scmp.lt.s32.totalorder %s8, 3
    %p113 = pnand %p111, %p112
    %p114 = pneg %p113
    // Predicated region
    $region25: #{pixelcnn_forward_pallas.1} parent=5 // pred_check
      _
    $region26: #{pixelcnn_forward_pallas.1} parent=5 // pred_check_branch
      %116 = sbr.rel (%p113) target = $region28
    $region27: #{pixelcnn_forward_pallas.1} parent=5 // pred_region
      %s117 = ssub.s32 %s8, 1
      %p118 = scmp.lt.s32.totalorder %s13, 1
      %s119 = scalar_select %p118, %s13, 1
      %s120 = smul.addr %s119, 2
      %s121 = smul.addr %s120, 8
      %s122 = scalar_lea.vmem %s0, %s121
      %p123 = pneg %p34
      %p124 = pneg %p31
      %p125 = pneg %p55
      %p126 = pneg %p52
      %p127 = pneg %p81
      %p128 = pneg %p78
      %p129 = scmp.lt.s32.totalorder %s13, 1
      %s130 = scalar_select %p129, %s13, 1
      %s131 = smul.addr %s130, 2
      %s132 = smul.addr %s131, 8
      %s133 = scalar_lea.vmem %s2, %s132
      %p134 = scmp.lt.s32.totalorder %s13, 1
      %s135 = scalar_select %p134, %s13, 1
      %s136 = smul.addr %s135, 2
      %s137 = smul.addr %s136, 8
      %s138 = scalar_lea.vmem %s0, %s137
      %p139 = scmp.lt.s32.totalorder %s13, 1
      %s140 = scalar_select %p139, %s13, 1
      %s141 = smul.addr %s140, 2
      %s142 = smul.addr %s141, 8
      %s143 = scalar_lea.vmem %s2, %s142
      %v144 = vld [vmem:[%s138] sm:$0xff]
      %v145 = vld [vmem:[%s138 + $0x8] sm:$0xff]
      %v146 = vld [vmem:[%s1] sm:$0xff]
      %v147 = vld [vmem:[%s1 + $0x8] sm:$0xff]
      %v148 = vld [vmem:[%s1 + $0x10] sm:$0xff]
      %v149 = vld [vmem:[%s1 + $0x18] sm:$0xff]
      %v150 = vld [vmem:[%s1 + $0x20] sm:$0xff]
      %v151 = vld [vmem:[%s1 + $0x28] sm:$0xff]
      %v152 = vld [vmem:[%s1 + $0x30] sm:$0xff]
      %v153 = vld [vmem:[%s1 + $0x38] sm:$0xff]
      %v154 = vld [vmem:[%s1 + $0x40] sm:$0xff]
      %v155 = vld [vmem:[%s1 + $0x48] sm:$0xff]
      %v156 = vld [vmem:[%s1 + $0x50] sm:$0xff]
      %v157 = vld [vmem:[%s1 + $0x58] sm:$0xff]
      %v158 = vld [vmem:[%s1 + $0x60] sm:$0xff]
      %v159 = vld [vmem:[%s1 + $0x68] sm:$0xff]
      %v160 = vld [vmem:[%s1 + $0x70] sm:$0xff]
      %v161 = vld [vmem:[%s1 + $0x78] sm:$0xff]
      %v162 = vld [vmem:[%s1 + $0x80] sm:$0xff]
      %v163 = vld [vmem:[%s1 + $0x88] sm:$0xff]
      %v164 = vld [vmem:[%s1 + $0x90] sm:$0xff]
      %v165 = vld [vmem:[%s1 + $0x98] sm:$0xff]
      %v166 = vld [vmem:[%s1 + $0xa0] sm:$0xff]
      %v167 = vld [vmem:[%s1 + $0xa8] sm:$0xff]
      %v168 = vld [vmem:[%s1 + $0xb0] sm:$0xff]
      %v169 = vld [vmem:[%s1 + $0xb8] sm:$0xff]
      %v170 = vld [vmem:[%s1 + $0xc0] sm:$0xff]
      %v171 = vld [vmem:[%s1 + $0xc8] sm:$0xff]
      %v172 = vld [vmem:[%s1 + $0xd0] sm:$0xff]
      %v173 = vld [vmem:[%s1 + $0xd8] sm:$0xff]
      %v174 = vld [vmem:[%s1 + $0xe0] sm:$0xff]
      %v175 = vld [vmem:[%s1 + $0xe8] sm:$0xff]
      %v176 = vld [vmem:[%s1 + $0xf0] sm:$0xff]
      %v177 = vld [vmem:[%s1 + $0xf8] sm:$0xff]
      %v178 = vld [vmem:[%s1 + $0x100] sm:$0xff]
      %v179 = vld [vmem:[%s1 + $0x108] sm:$0xff]
      %v180 = vld [vmem:[%s1 + $0x110] sm:$0xff]
      %v181 = vld [vmem:[%s1 + $0x118] sm:$0xff]
      %v182 = vld [vmem:[%s1 + $0x120] sm:$0xff]
      %v183 = vld [vmem:[%s1 + $0x128] sm:$0xff]
      %v184 = vld [vmem:[%s1 + $0x130] sm:$0xff]
      %v185 = vld [vmem:[%s1 + $0x138] sm:$0xff]
      %v186 = vld [vmem:[%s1 + $0x140] sm:$0xff]
      %v187 = vld [vmem:[%s1 + $0x148] sm:$0xff]
      %v188 = vld [vmem:[%s1 + $0x150] sm:$0xff]
      %v189 = vld [vmem:[%s1 + $0x158] sm:$0xff]
      %v190 = vld [vmem:[%s1 + $0x160] sm:$0xff]
      %v191 = vld [vmem:[%s1 + $0x168] sm:$0xff]
      %v192 = vld [vmem:[%s1 + $0x170] sm:$0xff]
      %v193 = vld [vmem:[%s1 + $0x178] sm:$0xff]
      %v194 = vld [vmem:[%s1 + $0x180] sm:$0xff]
      %v195 = vld [vmem:[%s1 + $0x188] sm:$0xff]
      %v196 = vld [vmem:[%s1 + $0x190] sm:$0xff]
      %v197 = vld [vmem:[%s1 + $0x198] sm:$0xff]
      %v198 = vld [vmem:[%s1 + $0x1a0] sm:$0xff]
      %v199 = vld [vmem:[%s1 + $0x1a8] sm:$0xff]
      %v200 = vld [vmem:[%s1 + $0x1b0] sm:$0xff]
      %v201 = vld [vmem:[%s1 + $0x1b8] sm:$0xff]
      %v202 = vld [vmem:[%s1 + $0x1c0] sm:$0xff]
      %v203 = vld [vmem:[%s1 + $0x1c8] sm:$0xff]
      %v204 = vld [vmem:[%s1 + $0x1d0] sm:$0xff]
      %v205 = vld [vmem:[%s1 + $0x1d8] sm:$0xff]
      %v206 = vld [vmem:[%s1 + $0x1e0] sm:$0xff]
      %v207 = vld [vmem:[%s1 + $0x1e8] sm:$0xff]
      %v208 = vld [vmem:[%s1 + $0x1f0] sm:$0xff]
      %v209 = vld [vmem:[%s1 + $0x1f8] sm:$0xff]
      %v210 = vand.u32 %v177, 4294901760
      %211 = vmatprep.subr.mxu0 %v210
      %v212 = vand.u32 %v176, 4294901760
      %213 = vmatpush1.msra.mxu0 %v212
      %v214 = vand.u32 %v175, 4294901760
      %215 = vmatprep.subr.mxu0 %v214
      %v216 = vand.u32 %v174, 4294901760
      %217 = vmatpush1.msra.mxu0 %v216
      %v218 = vand.u32 %v173, 4294901760
      %219 = vmatprep.subr.mxu0 %v218
      %v220 = vand.u32 %v172, 4294901760
      %221 = vmatpush1.msra.mxu0 %v220
      %v222 = vand.u32 %v171, 4294901760
      %223 = vmatprep.subr.mxu0 %v222
      %v224 = vand.u32 %v170, 4294901760
      %225 = vmatpush1.msra.mxu0 %v224
      %v226 = vand.u32 %v169, 4294901760
      %227 = vmatprep.subr.mxu0 %v226
      %v228 = vand.u32 %v168, 4294901760
      %229 = vmatpush1.msra.mxu0 %v228
      %v230 = vand.u32 %v167, 4294901760
      %231 = vmatprep.subr.mxu0 %v230
      %v232 = vand.u32 %v166, 4294901760
      %233 = vmatpush1.msra.mxu0 %v232
      %v234 = vand.u32 %v165, 4294901760
      %235 = vmatprep.subr.mxu0 %v234
      %v236 = vand.u32 %v164, 4294901760
      %237 = vmatpush1.msra.mxu0 %v236
      %v238 = vand.u32 %v163, 4294901760
      %239 = vmatprep.subr.mxu0 %v238
      %v240 = vand.u32 %v162, 4294901760
      %241 = vmatpush1.msra.mxu0 %v240
      %v242 = vand.u32 %v161, 4294901760
      %243 = vmatprep.subr.mxu0 %v242
      %v244 = vand.u32 %v160, 4294901760
      %245 = vmatpush1.msra.mxu0 %v244
      %v246 = vand.u32 %v159, 4294901760
      %247 = vmatprep.subr.mxu0 %v246
      %v248 = vand.u32 %v158, 4294901760
      %249 = vmatpush1.msra.mxu0 %v248
      %v250 = vand.u32 %v157, 4294901760
      %251 = vmatprep.subr.mxu0 %v250
      %v252 = vand.u32 %v156, 4294901760
      %253 = vmatpush1.msra.mxu0 %v252
      %v254 = vand.u32 %v155, 4294901760
      %255 = vmatprep.subr.mxu0 %v254
      %v256 = vand.u32 %v154, 4294901760
      %257 = vmatpush1.msra.mxu0 %v256
      %v258 = vand.u32 %v153, 4294901760
      %259 = vmatprep.subr.mxu0 %v258
      %v260 = vand.u32 %v152, 4294901760
      %261 = vmatpush1.msra.mxu0 %v260
      %v262 = vand.u32 %v151, 4294901760
      %263 = vmatprep.subr.mxu0 %v262
      %v264 = vand.u32 %v150, 4294901760
      %265 = vmatpush1.msra.mxu0 %v264
      %v266 = vand.u32 %v149, 4294901760
      %267 = vmatprep.subr.mxu0 %v266
      %v268 = vand.u32 %v148, 4294901760
      %269 = vmatpush1.msra.mxu0 %v268
      %v270 = vand.u32 %v147, 4294901760
      %271 = vmatprep.subr.mxu0 %v270
      %v272 = vand.u32 %v146, 4294901760
      %273 = vmatpush1.msra.mxu0 %v272
      %v274 = vand.u32 %v209, 4294901760
      %275 = vmatprep.subr.mxu0 %v274
      %v276 = vand.u32 %v208, 4294901760
      %277 = vmatpush2.msra.mxu0 %v276
      %v278 = vand.u32 %v207, 4294901760
      %279 = vmatprep.subr.mxu0 %v278
      %v280 = vand.u32 %v206, 4294901760
      %281 = vmatpush2.msra.mxu0 %v280
      %v282 = vand.u32 %v205, 4294901760
      %283 = vmatprep.subr.mxu0 %v282
      %v284 = vand.u32 %v204, 4294901760
      %285 = vmatpush2.msra.mxu0 %v284
      %v286 = vand.u32 %v203, 4294901760
      %287 = vmatprep.subr.mxu0 %v286
      %v288 = vand.u32 %v202, 4294901760
      %289 = vmatpush2.msra.mxu0 %v288
      %v290 = vand.u32 %v201, 4294901760
      %291 = vmatprep.subr.mxu0 %v290
      %v292 = vand.u32 %v200, 4294901760
      %293 = vmatpush2.msra.mxu0 %v292
      %v294 = vand.u32 %v199, 4294901760
      %295 = vmatprep.subr.mxu0 %v294
      %v296 = vand.u32 %v198, 4294901760
      %297 = vmatpush2.msra.mxu0 %v296
      %v298 = vand.u32 %v197, 4294901760
      %299 = vmatprep.subr.mxu0 %v298
      %v300 = vand.u32 %v196, 4294901760
      %301 = vmatpush2.msra.mxu0 %v300
      %v302 = vand.u32 %v195, 4294901760
      %303 = vmatprep.subr.mxu0 %v302
      %v304 = vand.u32 %v194, 4294901760
      %305 = vmatpush2.msra.mxu0 %v304
      %v306 = vand.u32 %v193, 4294901760
      %307 = vmatprep.subr.mxu0 %v306
      %v308 = vand.u32 %v192, 4294901760
      %309 = vmatpush2.msra.mxu0 %v308
      %v310 = vand.u32 %v191, 4294901760
      %311 = vmatprep.subr.mxu0 %v310
      %v312 = vand.u32 %v190, 4294901760
      %313 = vmatpush2.msra.mxu0 %v312
      %v314 = vand.u32 %v189, 4294901760
      %315 = vmatprep.subr.mxu0 %v314
      %v316 = vand.u32 %v188, 4294901760
      %317 = vmatpush2.msra.mxu0 %v316
      %v318 = vand.u32 %v187, 4294901760
      %319 = vmatprep.subr.mxu0 %v318
      %v320 = vand.u32 %v186, 4294901760
      %321 = vmatpush2.msra.mxu0 %v320
      %v322 = vand.u32 %v185, 4294901760
      %323 = vmatprep.subr.mxu0 %v322
      %v324 = vand.u32 %v184, 4294901760
      %325 = vmatpush2.msra.mxu0 %v324
      %v326 = vand.u32 %v183, 4294901760
      %327 = vmatprep.subr.mxu0 %v326
      %v328 = vand.u32 %v182, 4294901760
      %329 = vmatpush2.msra.mxu0 %v328
      %v330 = vand.u32 %v181, 4294901760
      %331 = vmatprep.subr.mxu0 %v330
      %v332 = vand.u32 %v180, 4294901760
      %333 = vmatpush2.msra.mxu0 %v332
      %v334 = vand.u32 %v179, 4294901760
      %335 = vmatprep.subr.mxu0 %v334
      %v336 = vand.u32 %v178, 4294901760
      %337 = vmatpush2.msra.mxu0 %v336
      %v338 = vand.u32 %v145, 4294901760
      %v339 = vsub.f32 %v145, %v338
      %v340 = vand.u32 %v339, 4294901760
      %v341 = vsub.f32 %v339, %v340
      %v342 = vand.u32 %v341, 4294901760
      %343 = vmatprep.mubr.f32.mxu0 %v342
      %v344 = vand.u32 %v144, 4294901760
      %v345 = vsub.f32 %v144, %v344
      %v346 = vand.u32 %v345, 4294901760
      %v347 = vsub.f32 %v345, %v346
      %v348 = vand.u32 %v347, 4294901760
      %349 = vmatmul.mubr.f32.gmra.mxu0 %v348
      %v350 = vpop.f32.mrf.mxu0
      %v351 = vadd.f32 0.0, %v350
      %v352 = vpop.f32.mrf.mxu0
      %v353 = vadd.f32 0.0, %v352
      %354 = vdwg.mxu0
      %v355 = vand.u32 %v177, 4294901760
      %v356 = vsub.f32 %v177, %v355
      %v357 = vand.u32 %v356, 4294901760
      %v358 = vsub.f32 %v356, %v357
      %v359 = vand.u32 %v358, 4294901760
      %360 = vmatprep.subr.mxu0 %v359
      %v361 = vand.u32 %v176, 4294901760
      %v362 = vsub.f32 %v176, %v361
      %v363 = vand.u32 %v362, 4294901760
      %v364 = vsub.f32 %v362, %v363
      %v365 = vand.u32 %v364, 4294901760
      %366 = vmatpush1.msra.mxu0 %v365
      %v367 = vand.u32 %v175, 4294901760
      %v368 = vsub.f32 %v175, %v367
      %v369 = vand.u32 %v368, 4294901760
      %v370 = vsub.f32 %v368, %v369
      %v371 = vand.u32 %v370, 4294901760
      %372 = vmatprep.subr.mxu0 %v371
      %v373 = vand.u32 %v174, 4294901760
      %v374 = vsub.f32 %v174, %v373
      %v375 = vand.u32 %v374, 4294901760
      %v376 = vsub.f32 %v374, %v375
      %v377 = vand.u32 %v376, 4294901760
      %378 = vmatpush1.msra.mxu0 %v377
      %v379 = vand.u32 %v173, 4294901760
      %v380 = vsub.f32 %v173, %v379
      %v381 = vand.u32 %v380, 4294901760
      %v382 = vsub.f32 %v380, %v381
      %v383 = vand.u32 %v382, 4294901760
      %384 = vmatprep.subr.mxu0 %v383
      %v385 = vand.u32 %v172, 4294901760
      %v386 = vsub.f32 %v172, %v385
      %v387 = vand.u32 %v386, 4294901760
      %v388 = vsub.f32 %v386, %v387
      %v389 = vand.u32 %v388, 4294901760
      %390 = vmatpush1.msra.mxu0 %v389
      %v391 = vand.u32 %v171, 4294901760
      %v392 = vsub.f32 %v171, %v391
      %v393 = vand.u32 %v392, 4294901760
      %v394 = vsub.f32 %v392, %v393
      %v395 = vand.u32 %v394, 4294901760
      %396 = vmatprep.subr.mxu0 %v395
      %v397 = vand.u32 %v170, 4294901760
      %v398 = vsub.f32 %v170, %v397
      %v399 = vand.u32 %v398, 4294901760
      %v400 = vsub.f32 %v398, %v399
      %v401 = vand.u32 %v400, 4294901760
      %402 = vmatpush1.msra.mxu0 %v401
      %v403 = vand.u32 %v169, 4294901760
      %v404 = vsub.f32 %v169, %v403
      %v405 = vand.u32 %v404, 4294901760
      %v406 = vsub.f32 %v404, %v405
      %v407 = vand.u32 %v406, 4294901760
      %408 = vmatprep.subr.mxu0 %v407
      %v409 = vand.u32 %v168, 4294901760
      %v410 = vsub.f32 %v168, %v409
      %v411 = vand.u32 %v410, 4294901760
      %v412 = vsub.f32 %v410, %v411
      %v413 = vand.u32 %v412, 4294901760
      %414 = vmatpush1.msra.mxu0 %v413
      %v415 = vand.u32 %v167, 4294901760
      %v416 = vsub.f32 %v167, %v415
      %v417 = vand.u32 %v416, 4294901760
      %v418 = vsub.f32 %v416, %v417
      %v419 = vand.u32 %v418, 4294901760
      %420 = vmatprep.subr.mxu0 %v419
      %v421 = vand.u32 %v166, 4294901760
      %v422 = vsub.f32 %v166, %v421
      %v423 = vand.u32 %v422, 4294901760
      %v424 = vsub.f32 %v422, %v423
      %v425 = vand.u32 %v424, 4294901760
      %426 = vmatpush1.msra.mxu0 %v425
      %v427 = vand.u32 %v165, 4294901760
      %v428 = vsub.f32 %v165, %v427
      %v429 = vand.u32 %v428, 4294901760
      %v430 = vsub.f32 %v428, %v429
      %v431 = vand.u32 %v430, 4294901760
      %432 = vmatprep.subr.mxu0 %v431
      %v433 = vand.u32 %v164, 4294901760
      %v434 = vsub.f32 %v164, %v433
      %v435 = vand.u32 %v434, 4294901760
      %v436 = vsub.f32 %v434, %v435
      %v437 = vand.u32 %v436, 4294901760
      %438 = vmatpush1.msra.mxu0 %v437
      %v439 = vand.u32 %v163, 4294901760
      %v440 = vsub.f32 %v163, %v439
      %v441 = vand.u32 %v440, 4294901760
      %v442 = vsub.f32 %v440, %v441
      %v443 = vand.u32 %v442, 4294901760
      %444 = vmatprep.subr.mxu0 %v443
      %v445 = vand.u32 %v162, 4294901760
      %v446 = vsub.f32 %v162, %v445
      %v447 = vand.u32 %v446, 4294901760
      %v448 = vsub.f32 %v446, %v447
      %v449 = vand.u32 %v448, 4294901760
      %450 = vmatpush1.msra.mxu0 %v449
      %v451 = vand.u32 %v161, 4294901760
      %v452 = vsub.f32 %v161, %v451
      %v453 = vand.u32 %v452, 4294901760
      %v454 = vsub.f32 %v452, %v453
      %v455 = vand.u32 %v454, 4294901760
      %456 = vmatprep.subr.mxu0 %v455
      %v457 = vand.u32 %v160, 4294901760
      %v458 = vsub.f32 %v160, %v457
      %v459 = vand.u32 %v458, 4294901760
      %v460 = vsub.f32 %v458, %v459
      %v461 = vand.u32 %v460, 4294901760
      %462 = vmatpush1.msra.mxu0 %v461
      %v463 = vand.u32 %v159, 4294901760
      %v464 = vsub.f32 %v159, %v463
      %v465 = vand.u32 %v464, 4294901760
      %v466 = vsub.f32 %v464, %v465
      %v467 = vand.u32 %v466, 4294901760
      %468 = vmatprep.subr.mxu0 %v467
      %v469 = vand.u32 %v158, 4294901760
      %v470 = vsub.f32 %v158, %v469
      %v471 = vand.u32 %v470, 4294901760
      %v472 = vsub.f32 %v470, %v471
      %v473 = vand.u32 %v472, 4294901760
      %474 = vmatpush1.msra.mxu0 %v473
      %v475 = vand.u32 %v157, 4294901760
      %v476 = vsub.f32 %v157, %v475
      %v477 = vand.u32 %v476, 4294901760
      %v478 = vsub.f32 %v476, %v477
      %v479 = vand.u32 %v478, 4294901760
      %480 = vmatprep.subr.mxu0 %v479
      %v481 = vand.u32 %v156, 4294901760
      %v482 = vsub.f32 %v156, %v481
      %v483 = vand.u32 %v482, 4294901760
      %v484 = vsub.f32 %v482, %v483
      %v485 = vand.u32 %v484, 4294901760
      %486 = vmatpush1.msra.mxu0 %v485
      %v487 = vand.u32 %v155, 4294901760
      %v488 = vsub.f32 %v155, %v487
      %v489 = vand.u32 %v488, 4294901760
      %v490 = vsub.f32 %v488, %v489
      %v491 = vand.u32 %v490, 4294901760
      %492 = vmatprep.subr.mxu0 %v491
      %v493 = vand.u32 %v154, 4294901760
      %v494 = vsub.f32 %v154, %v493
      %v495 = vand.u32 %v494, 4294901760
      %v496 = vsub.f32 %v494, %v495
      %v497 = vand.u32 %v496, 4294901760
      %498 = vmatpush1.msra.mxu0 %v497
      %v499 = vand.u32 %v153, 4294901760
      %v500 = vsub.f32 %v153, %v499
      %v501 = vand.u32 %v500, 4294901760
      %v502 = vsub.f32 %v500, %v501
      %v503 = vand.u32 %v502, 4294901760
      %504 = vmatprep.subr.mxu0 %v503
      %v505 = vand.u32 %v152, 4294901760
      %v506 = vsub.f32 %v152, %v505
      %v507 = vand.u32 %v506, 4294901760
      %v508 = vsub.f32 %v506, %v507
      %v509 = vand.u32 %v508, 4294901760
      %510 = vmatpush1.msra.mxu0 %v509
      %v511 = vand.u32 %v151, 4294901760
      %v512 = vsub.f32 %v151, %v511
      %v513 = vand.u32 %v512, 4294901760
      %v514 = vsub.f32 %v512, %v513
      %v515 = vand.u32 %v514, 4294901760
      %516 = vmatprep.subr.mxu0 %v515
      %v517 = vand.u32 %v150, 4294901760
      %v518 = vsub.f32 %v150, %v517
      %v519 = vand.u32 %v518, 4294901760
      %v520 = vsub.f32 %v518, %v519
      %v521 = vand.u32 %v520, 4294901760
      %522 = vmatpush1.msra.mxu0 %v521
      %v523 = vand.u32 %v149, 4294901760
      %v524 = vsub.f32 %v149, %v523
      %v525 = vand.u32 %v524, 4294901760
      %v526 = vsub.f32 %v524, %v525
      %v527 = vand.u32 %v526, 4294901760
      %528 = vmatprep.subr.mxu0 %v527
      %v529 = vand.u32 %v148, 4294901760
      %v530 = vsub.f32 %v148, %v529
      %v531 = vand.u32 %v530, 4294901760
      %v532 = vsub.f32 %v530, %v531
      %v533 = vand.u32 %v532, 4294901760
      %534 = vmatpush1.msra.mxu0 %v533
      %v535 = vand.u32 %v147, 4294901760
      %v536 = vsub.f32 %v147, %v535
      %v537 = vand.u32 %v536, 4294901760
      %v538 = vsub.f32 %v536, %v537
      %v539 = vand.u32 %v538, 4294901760
      %540 = vmatprep.subr.mxu0 %v539
      %v541 = vand.u32 %v146, 4294901760
      %v542 = vsub.f32 %v146, %v541
      %v543 = vand.u32 %v542, 4294901760
      %v544 = vsub.f32 %v542, %v543
      %v545 = vand.u32 %v544, 4294901760
      %546 = vmatpush1.msra.mxu0 %v545
      %v547 = vand.u32 %v209, 4294901760
      %v548 = vsub.f32 %v209, %v547
      %v549 = vand.u32 %v548, 4294901760
      %v550 = vsub.f32 %v548, %v549
      %v551 = vand.u32 %v550, 4294901760
      %552 = vmatprep.subr.mxu0 %v551
      %v553 = vand.u32 %v208, 4294901760
      %v554 = vsub.f32 %v208, %v553
      %v555 = vand.u32 %v554, 4294901760
      %v556 = vsub.f32 %v554, %v555
      %v557 = vand.u32 %v556, 4294901760
      %558 = vmatpush2.msra.mxu0 %v557
      %v559 = vand.u32 %v207, 4294901760
      %v560 = vsub.f32 %v207, %v559
      %v561 = vand.u32 %v560, 4294901760
      %v562 = vsub.f32 %v560, %v561
      %v563 = vand.u32 %v562, 4294901760
      %564 = vmatprep.subr.mxu0 %v563
      %v565 = vand.u32 %v206, 4294901760
      %v566 = vsub.f32 %v206, %v565
      %v567 = vand.u32 %v566, 4294901760
      %v568 = vsub.f32 %v566, %v567
      %v569 = vand.u32 %v568, 4294901760
      %570 = vmatpush2.msra.mxu0 %v569
      %v571 = vand.u32 %v205, 4294901760
      %v572 = vsub.f32 %v205, %v571
      %v573 = vand.u32 %v572, 4294901760
      %v574 = vsub.f32 %v572, %v573
      %v575 = vand.u32 %v574, 4294901760
      %576 = vmatprep.subr.mxu0 %v575
      %v577 = vand.u32 %v204, 4294901760
      %v578 = vsub.f32 %v204, %v577
      %v579 = vand.u32 %v578, 4294901760
      %v580 = vsub.f32 %v578, %v579
      %v581 = vand.u32 %v580, 4294901760
      %582 = vmatpush2.msra.mxu0 %v581
      %v583 = vand.u32 %v203, 4294901760
      %v584 = vsub.f32 %v203, %v583
      %v585 = vand.u32 %v584, 4294901760
      %v586 = vsub.f32 %v584, %v585
      %v587 = vand.u32 %v586, 4294901760
      %588 = vmatprep.subr.mxu0 %v587
      %v589 = vand.u32 %v202, 4294901760
      %v590 = vsub.f32 %v202, %v589
      %v591 = vand.u32 %v590, 4294901760
      %v592 = vsub.f32 %v590, %v591
      %v593 = vand.u32 %v592, 4294901760
      %594 = vmatpush2.msra.mxu0 %v593
      %v595 = vand.u32 %v201, 4294901760
      %v596 = vsub.f32 %v201, %v595
      %v597 = vand.u32 %v596, 4294901760
      %v598 = vsub.f32 %v596, %v597
      %v599 = vand.u32 %v598, 4294901760
      %600 = vmatprep.subr.mxu0 %v599
      %v601 = vand.u32 %v200, 4294901760
      %v602 = vsub.f32 %v200, %v601
      %v603 = vand.u32 %v602, 4294901760
      %v604 = vsub.f32 %v602, %v603
      %v605 = vand.u32 %v604, 4294901760
      %606 = vmatpush2.msra.mxu0 %v605
      %v607 = vand.u32 %v199, 4294901760
      %v608 = vsub.f32 %v199, %v607
      %v609 = vand.u32 %v608, 4294901760
      %v610 = vsub.f32 %v608, %v609
      %v611 = vand.u32 %v610, 4294901760
      %612 = vmatprep.subr.mxu0 %v611
      %v613 = vand.u32 %v198, 4294901760
      %v614 = vsub.f32 %v198, %v613
      %v615 = vand.u32 %v614, 4294901760
      %v616 = vsub.f32 %v614, %v615
      %v617 = vand.u32 %v616, 4294901760
      %618 = vmatpush2.msra.mxu0 %v617
      %v619 = vand.u32 %v197, 4294901760
      %v620 = vsub.f32 %v197, %v619
      %v621 = vand.u32 %v620, 4294901760
      %v622 = vsub.f32 %v620, %v621
      %v623 = vand.u32 %v622, 4294901760
      %624 = vmatprep.subr.mxu0 %v623
      %v625 = vand.u32 %v196, 4294901760
      %v626 = vsub.f32 %v196, %v625
      %v627 = vand.u32 %v626, 4294901760
      %v628 = vsub.f32 %v626, %v627
      %v629 = vand.u32 %v628, 4294901760
      %630 = vmatpush2.msra.mxu0 %v629
      %v631 = vand.u32 %v195, 4294901760
      %v632 = vsub.f32 %v195, %v631
      %v633 = vand.u32 %v632, 4294901760
      %v634 = vsub.f32 %v632, %v633
      %v635 = vand.u32 %v634, 4294901760
      %636 = vmatprep.subr.mxu0 %v635
      %v637 = vand.u32 %v194, 4294901760
      %v638 = vsub.f32 %v194, %v637
      %v639 = vand.u32 %v638, 4294901760
      %v640 = vsub.f32 %v638, %v639
      %v641 = vand.u32 %v640, 4294901760
      %642 = vmatpush2.msra.mxu0 %v641
      %v643 = vand.u32 %v193, 4294901760
      %v644 = vsub.f32 %v193, %v643
      %v645 = vand.u32 %v644, 4294901760
      %v646 = vsub.f32 %v644, %v645
      %v647 = vand.u32 %v646, 4294901760
      %648 = vmatprep.subr.mxu0 %v647
      %v649 = vand.u32 %v192, 4294901760
      %v650 = vsub.f32 %v192, %v649
      %v651 = vand.u32 %v650, 4294901760
      %v652 = vsub.f32 %v650, %v651
      %v653 = vand.u32 %v652, 4294901760
      %654 = vmatpush2.msra.mxu0 %v653
      %v655 = vand.u32 %v191, 4294901760
      %v656 = vsub.f32 %v191, %v655
      %v657 = vand.u32 %v656, 4294901760
      %v658 = vsub.f32 %v656, %v657
      %v659 = vand.u32 %v658, 4294901760
      %660 = vmatprep.subr.mxu0 %v659
      %v661 = vand.u32 %v190, 4294901760
      %v662 = vsub.f32 %v190, %v661
      %v663 = vand.u32 %v662, 4294901760
      %v664 = vsub.f32 %v662, %v663
      %v665 = vand.u32 %v664, 4294901760
      %666 = vmatpush2.msra.mxu0 %v665
      %v667 = vand.u32 %v189, 4294901760
      %v668 = vsub.f32 %v189, %v667
      %v669 = vand.u32 %v668, 4294901760
      %v670 = vsub.f32 %v668, %v669
      %v671 = vand.u32 %v670, 4294901760
      %672 = vmatprep.subr.mxu0 %v671
      %v673 = vand.u32 %v188, 4294901760
      %v674 = vsub.f32 %v188, %v673
      %v675 = vand.u32 %v674, 4294901760
      %v676 = vsub.f32 %v674, %v675
      %v677 = vand.u32 %v676, 4294901760
      %678 = vmatpush2.msra.mxu0 %v677
      %v679 = vand.u32 %v187, 4294901760
      %v680 = vsub.f32 %v187, %v679
      %v681 = vand.u32 %v680, 4294901760
      %v682 = vsub.f32 %v680, %v681
      %v683 = vand.u32 %v682, 4294901760
      %684 = vmatprep.subr.mxu0 %v683
      %v685 = vand.u32 %v186, 4294901760
      %v686 = vsub.f32 %v186, %v685
      %v687 = vand.u32 %v686, 4294901760
      %v688 = vsub.f32 %v686, %v687
      %v689 = vand.u32 %v688, 4294901760
      %690 = vmatpush2.msra.mxu0 %v689
      %v691 = vand.u32 %v185, 4294901760
      %v692 = vsub.f32 %v185, %v691
      %v693 = vand.u32 %v692, 4294901760
      %v694 = vsub.f32 %v692, %v693
      %v695 = vand.u32 %v694, 4294901760
      %696 = vmatprep.subr.mxu0 %v695
      %v697 = vand.u32 %v184, 4294901760
      %v698 = vsub.f32 %v184, %v697
      %v699 = vand.u32 %v698, 4294901760
      %v700 = vsub.f32 %v698, %v699
      %v701 = vand.u32 %v700, 4294901760
      %702 = vmatpush2.msra.mxu0 %v701
      %v703 = vand.u32 %v183, 4294901760
      %v704 = vsub.f32 %v183, %v703
      %v705 = vand.u32 %v704, 4294901760
      %v706 = vsub.f32 %v704, %v705
      %v707 = vand.u32 %v706, 4294901760
      %708 = vmatprep.subr.mxu0 %v707
      %v709 = vand.u32 %v182, 4294901760
      %v710 = vsub.f32 %v182, %v709
      %v711 = vand.u32 %v710, 4294901760
      %v712 = vsub.f32 %v710, %v711
      %v713 = vand.u32 %v712, 4294901760
      %714 = vmatpush2.msra.mxu0 %v713
      %v715 = vand.u32 %v181, 4294901760
      %v716 = vsub.f32 %v181, %v715
      %v717 = vand.u32 %v716, 4294901760
      %v718 = vsub.f32 %v716, %v717
      %v719 = vand.u32 %v718, 4294901760
      %720 = vmatprep.subr.mxu0 %v719
      %v721 = vand.u32 %v180, 4294901760
      %v722 = vsub.f32 %v180, %v721
      %v723 = vand.u32 %v722, 4294901760
      %v724 = vsub.f32 %v722, %v723
      %v725 = vand.u32 %v724, 4294901760
      %726 = vmatpush2.msra.mxu0 %v725
      %v727 = vand.u32 %v179, 4294901760
      %v728 = vsub.f32 %v179, %v727
      %v729 = vand.u32 %v728, 4294901760
      %v730 = vsub.f32 %v728, %v729
      %v731 = vand.u32 %v730, 4294901760
      %732 = vmatprep.subr.mxu0 %v731
      %v733 = vand.u32 %v178, 4294901760
      %v734 = vsub.f32 %v178, %v733
      %v735 = vand.u32 %v734, 4294901760
      %v736 = vsub.f32 %v734, %v735
      %v737 = vand.u32 %v736, 4294901760
      %738 = vmatpush2.msra.mxu0 %v737
      %v739 = vand.u32 %v145, 4294901760
      %740 = vmatprep.mubr.f32.mxu0 %v739
      %v741 = vand.u32 %v144, 4294901760
      %742 = vmatmul.mubr.f32.gmra.mxu0 %v741
      %v743 = vpop.f32.mrf.mxu0
      %v744 = vadd.f32 %v351, %v743
      %v745 = vpop.f32.mrf.mxu0
      %v746 = vadd.f32 %v353, %v745
      %747 = vdwg.mxu0
      %v748 = vand.u32 %v177, 4294901760
      %v749 = vsub.f32 %v177, %v748
      %750 = vmatprep.subr.mxu0 %v749
      %v751 = vand.u32 %v176, 4294901760
      %v752 = vsub.f32 %v176, %v751
      %753 = vmatpush1.msra.mxu0 %v752
      %v754 = vand.u32 %v175, 4294901760
      %v755 = vsub.f32 %v175, %v754
      %756 = vmatprep.subr.mxu0 %v755
      %v757 = vand.u32 %v174, 4294901760
      %v758 = vsub.f32 %v174, %v757
      %759 = vmatpush1.msra.mxu0 %v758
      %v760 = vand.u32 %v173, 4294901760
      %v761 = vsub.f32 %v173, %v760
      %762 = vmatprep.subr.mxu0 %v761
      %v763 = vand.u32 %v172, 4294901760
      %v764 = vsub.f32 %v172, %v763
      %765 = vmatpush1.msra.mxu0 %v764
      %v766 = vand.u32 %v171, 4294901760
      %v767 = vsub.f32 %v171, %v766
      %768 = vmatprep.subr.mxu0 %v767
      %v769 = vand.u32 %v170, 4294901760
      %v770 = vsub.f32 %v170, %v769
      %771 = vmatpush1.msra.mxu0 %v770
      %v772 = vand.u32 %v169, 4294901760
      %v773 = vsub.f32 %v169, %v772
      %774 = vmatprep.subr.mxu0 %v773
      %v775 = vand.u32 %v168, 4294901760
      %v776 = vsub.f32 %v168, %v775
      %777 = vmatpush1.msra.mxu0 %v776
      %v778 = vand.u32 %v167, 4294901760
      %v779 = vsub.f32 %v167, %v778
      %780 = vmatprep.subr.mxu0 %v779
      %v781 = vand.u32 %v166, 4294901760
      %v782 = vsub.f32 %v166, %v781
      %783 = vmatpush1.msra.mxu0 %v782
      %v784 = vand.u32 %v165, 4294901760
      %v785 = vsub.f32 %v165, %v784
      %786 = vmatprep.subr.mxu0 %v785
      %v787 = vand.u32 %v164, 4294901760
      %v788 = vsub.f32 %v164, %v787
      %789 = vmatpush1.msra.mxu0 %v788
      %v790 = vand.u32 %v163, 4294901760
      %v791 = vsub.f32 %v163, %v790
      %792 = vmatprep.subr.mxu0 %v791
      %v793 = vand.u32 %v162, 4294901760
      %v794 = vsub.f32 %v162, %v793
      %795 = vmatpush1.msra.mxu0 %v794
      %v796 = vand.u32 %v161, 4294901760
      %v797 = vsub.f32 %v161, %v796
      %798 = vmatprep.subr.mxu0 %v797
      %v799 = vand.u32 %v160, 4294901760
      %v800 = vsub.f32 %v160, %v799
      %801 = vmatpush1.msra.mxu0 %v800
      %v802 = vand.u32 %v159, 4294901760
      %v803 = vsub.f32 %v159, %v802
      %804 = vmatprep.subr.mxu0 %v803
      %v805 = vand.u32 %v158, 4294901760
      %v806 = vsub.f32 %v158, %v805
      %807 = vmatpush1.msra.mxu0 %v806
      %v808 = vand.u32 %v157, 4294901760
      %v809 = vsub.f32 %v157, %v808
      %810 = vmatprep.subr.mxu0 %v809
      %v811 = vand.u32 %v156, 4294901760
      %v812 = vsub.f32 %v156, %v811
      %813 = vmatpush1.msra.mxu0 %v812
      %v814 = vand.u32 %v155, 4294901760
      %v815 = vsub.f32 %v155, %v814
      %816 = vmatprep.subr.mxu0 %v815
      %v817 = vand.u32 %v154, 4294901760
      %v818 = vsub.f32 %v154, %v817
      %819 = vmatpush1.msra.mxu0 %v818
      %v820 = vand.u32 %v153, 4294901760
      %v821 = vsub.f32 %v153, %v820
      %822 = vmatprep.subr.mxu0 %v821
      %v823 = vand.u32 %v152, 4294901760
      %v824 = vsub.f32 %v152, %v823
      %825 = vmatpush1.msra.mxu0 %v824
      %v826 = vand.u32 %v151, 4294901760
      %v827 = vsub.f32 %v151, %v826
      %828 = vmatprep.subr.mxu0 %v827
      %v829 = vand.u32 %v150, 4294901760
      %v830 = vsub.f32 %v150, %v829
      %831 = vmatpush1.msra.mxu0 %v830
      %v832 = vand.u32 %v149, 4294901760
      %v833 = vsub.f32 %v149, %v832
      %834 = vmatprep.subr.mxu0 %v833
      %v835 = vand.u32 %v148, 4294901760
      %v836 = vsub.f32 %v148, %v835
      %837 = vmatpush1.msra.mxu0 %v836
      %v838 = vand.u32 %v147, 4294901760
      %v839 = vsub.f32 %v147, %v838
      %840 = vmatprep.subr.mxu0 %v839
      %v841 = vand.u32 %v146, 4294901760
      %v842 = vsub.f32 %v146, %v841
      %843 = vmatpush1.msra.mxu0 %v842
      %v844 = vand.u32 %v209, 4294901760
      %v845 = vsub.f32 %v209, %v844
      %846 = vmatprep.subr.mxu0 %v845
      %v847 = vand.u32 %v208, 4294901760
      %v848 = vsub.f32 %v208, %v847
      %849 = vmatpush2.msra.mxu0 %v848
      %v850 = vand.u32 %v207, 4294901760
      %v851 = vsub.f32 %v207, %v850
      %852 = vmatprep.subr.mxu0 %v851
      %v853 = vand.u32 %v206, 4294901760
      %v854 = vsub.f32 %v206, %v853
      %855 = vmatpush2.msra.mxu0 %v854
      %v856 = vand.u32 %v205, 4294901760
      %v857 = vsub.f32 %v205, %v856
      %858 = vmatprep.subr.mxu0 %v857
      %v859 = vand.u32 %v204, 4294901760
      %v860 = vsub.f32 %v204, %v859
      %861 = vmatpush2.msra.mxu0 %v860
      %v862 = vand.u32 %v203, 4294901760
      %v863 = vsub.f32 %v203, %v862
      %864 = vmatprep.subr.mxu0 %v863
      %v865 = vand.u32 %v202, 4294901760
      %v866 = vsub.f32 %v202, %v865
      %867 = vmatpush2.msra.mxu0 %v866
      %v868 = vand.u32 %v201, 4294901760
      %v869 = vsub.f32 %v201, %v868
      %870 = vmatprep.subr.mxu0 %v869
      %v871 = vand.u32 %v200, 4294901760
      %v872 = vsub.f32 %v200, %v871
      %873 = vmatpush2.msra.mxu0 %v872
      %v874 = vand.u32 %v199, 4294901760
      %v875 = vsub.f32 %v199, %v874
      %876 = vmatprep.subr.mxu0 %v875
      %v877 = vand.u32 %v198, 4294901760
      %v878 = vsub.f32 %v198, %v877
      %879 = vmatpush2.msra.mxu0 %v878
      %v880 = vand.u32 %v197, 4294901760
      %v881 = vsub.f32 %v197, %v880
      %882 = vmatprep.subr.mxu0 %v881
      %v883 = vand.u32 %v196, 4294901760
      %v884 = vsub.f32 %v196, %v883
      %885 = vmatpush2.msra.mxu0 %v884
      %v886 = vand.u32 %v195, 4294901760
      %v887 = vsub.f32 %v195, %v886
      %888 = vmatprep.subr.mxu0 %v887
      %v889 = vand.u32 %v194, 4294901760
      %v890 = vsub.f32 %v194, %v889
      %891 = vmatpush2.msra.mxu0 %v890
      %v892 = vand.u32 %v193, 4294901760
      %v893 = vsub.f32 %v193, %v892
      %894 = vmatprep.subr.mxu0 %v893
      %v895 = vand.u32 %v192, 4294901760
      %v896 = vsub.f32 %v192, %v895
      %897 = vmatpush2.msra.mxu0 %v896
      %v898 = vand.u32 %v191, 4294901760
      %v899 = vsub.f32 %v191, %v898
      %900 = vmatprep.subr.mxu0 %v899
      %v901 = vand.u32 %v190, 4294901760
      %v902 = vsub.f32 %v190, %v901
      %903 = vmatpush2.msra.mxu0 %v902
      %v904 = vand.u32 %v189, 4294901760
      %v905 = vsub.f32 %v189, %v904
      %906 = vmatprep.subr.mxu0 %v905
      %v907 = vand.u32 %v188, 4294901760
      %v908 = vsub.f32 %v188, %v907
      %909 = vmatpush2.msra.mxu0 %v908
      %v910 = vand.u32 %v187, 4294901760
      %v911 = vsub.f32 %v187, %v910
      %912 = vmatprep.subr.mxu0 %v911
      %v913 = vand.u32 %v186, 4294901760
      %v914 = vsub.f32 %v186, %v913
      %915 = vmatpush2.msra.mxu0 %v914
      %v916 = vand.u32 %v185, 4294901760
      %v917 = vsub.f32 %v185, %v916
      %918 = vmatprep.subr.mxu0 %v917
      %v919 = vand.u32 %v184, 4294901760
      %v920 = vsub.f32 %v184, %v919
      %921 = vmatpush2.msra.mxu0 %v920
      %v922 = vand.u32 %v183, 4294901760
      %v923 = vsub.f32 %v183, %v922
      %924 = vmatprep.subr.mxu0 %v923
      %v925 = vand.u32 %v182, 4294901760
      %v926 = vsub.f32 %v182, %v925
      %927 = vmatpush2.msra.mxu0 %v926
      %v928 = vand.u32 %v181, 4294901760
      %v929 = vsub.f32 %v181, %v928
      %930 = vmatprep.subr.mxu0 %v929
      %v931 = vand.u32 %v180, 4294901760
      %v932 = vsub.f32 %v180, %v931
      %933 = vmatpush2.msra.mxu0 %v932
      %v934 = vand.u32 %v179, 4294901760
      %v935 = vsub.f32 %v179, %v934
      %936 = vmatprep.subr.mxu0 %v935
      %v937 = vand.u32 %v178, 4294901760
      %v938 = vsub.f32 %v178, %v937
      %939 = vmatpush2.msra.mxu0 %v938
      %v940 = vand.u32 %v145, 4294901760
      %v941 = vsub.f32 %v145, %v940
      %942 = vmatprep.mubr.f32.mxu0 %v941
      %v943 = vand.u32 %v144, 4294901760
      %v944 = vsub.f32 %v144, %v943
      %945 = vmatmul.mubr.f32.gmra.mxu0 %v944
      %v946 = vpop.f32.mrf.mxu0
      %v947 = vadd.f32 %v744, %v946
      %v948 = vpop.f32.mrf.mxu0
      %v949 = vadd.f32 %v746, %v948
      %950 = vdwg.mxu0
      %v951 = vand.u32 %v177, 4294901760
      %952 = vmatprep.subr.mxu0 %v951
      %v953 = vand.u32 %v176, 4294901760
      %954 = vmatpush1.msra.mxu0 %v953
      %v955 = vand.u32 %v175, 4294901760
      %956 = vmatprep.subr.mxu0 %v955
      %v957 = vand.u32 %v174, 4294901760
      %958 = vmatpush1.msra.mxu0 %v957
      %v959 = vand.u32 %v173, 4294901760
      %960 = vmatprep.subr.mxu0 %v959
      %v961 = vand.u32 %v172, 4294901760
      %962 = vmatpush1.msra.mxu0 %v961
      %v963 = vand.u32 %v171, 4294901760
      %964 = vmatprep.subr.mxu0 %v963
      %v965 = vand.u32 %v170, 4294901760
      %966 = vmatpush1.msra.mxu0 %v965
      %v967 = vand.u32 %v169, 4294901760
      %968 = vmatprep.subr.mxu0 %v967
      %v969 = vand.u32 %v168, 4294901760
      %970 = vmatpush1.msra.mxu0 %v969
      %v971 = vand.u32 %v167, 4294901760
      %972 = vmatprep.subr.mxu0 %v971
      %v973 = vand.u32 %v166, 4294901760
      %974 = vmatpush1.msra.mxu0 %v973
      %v975 = vand.u32 %v165, 4294901760
      %976 = vmatprep.subr.mxu0 %v975
      %v977 = vand.u32 %v164, 4294901760
      %978 = vmatpush1.msra.mxu0 %v977
      %v979 = vand.u32 %v163, 4294901760
      %980 = vmatprep.subr.mxu0 %v979
      %v981 = vand.u32 %v162, 4294901760
      %982 = vmatpush1.msra.mxu0 %v981
      %v983 = vand.u32 %v161, 4294901760
      %984 = vmatprep.subr.mxu0 %v983
      %v985 = vand.u32 %v160, 4294901760
      %986 = vmatpush1.msra.mxu0 %v985
      %v987 = vand.u32 %v159, 4294901760
      %988 = vmatprep.subr.mxu0 %v987
      %v989 = vand.u32 %v158, 4294901760
      %990 = vmatpush1.msra.mxu0 %v989
      %v991 = vand.u32 %v157, 4294901760
      %992 = vmatprep.subr.mxu0 %v991
      %v993 = vand.u32 %v156, 4294901760
      %994 = vmatpush1.msra.mxu0 %v993
      %v995 = vand.u32 %v155, 4294901760
      %996 = vmatprep.subr.mxu0 %v995
      %v997 = vand.u32 %v154, 4294901760
      %998 = vmatpush1.msra.mxu0 %v997
      %v999 = vand.u32 %v153, 4294901760
      %1000 = vmatprep.subr.mxu0 %v999
      %v1001 = vand.u32 %v152, 4294901760
      %1002 = vmatpush1.msra.mxu0 %v1001
      %v1003 = vand.u32 %v151, 4294901760
      %1004 = vmatprep.subr.mxu0 %v1003
      %v1005 = vand.u32 %v150, 4294901760
      %1006 = vmatpush1.msra.mxu0 %v1005
      %v1007 = vand.u32 %v149, 4294901760
      %1008 = vmatprep.subr.mxu0 %v1007
      %v1009 = vand.u32 %v148, 4294901760
      %1010 = vmatpush1.msra.mxu0 %v1009
      %v1011 = vand.u32 %v147, 4294901760
      %1012 = vmatprep.subr.mxu0 %v1011
      %v1013 = vand.u32 %v146, 4294901760
      %1014 = vmatpush1.msra.mxu0 %v1013
      %v1015 = vand.u32 %v209, 4294901760
      %1016 = vmatprep.subr.mxu0 %v1015
      %v1017 = vand.u32 %v208, 4294901760
      %1018 = vmatpush2.msra.mxu0 %v1017
      %v1019 = vand.u32 %v207, 4294901760
      %1020 = vmatprep.subr.mxu0 %v1019
      %v1021 = vand.u32 %v206, 4294901760
      %1022 = vmatpush2.msra.mxu0 %v1021
      %v1023 = vand.u32 %v205, 4294901760
      %1024 = vmatprep.subr.mxu0 %v1023
      %v1025 = vand.u32 %v204, 4294901760
      %1026 = vmatpush2.msra.mxu0 %v1025
      %v1027 = vand.u32 %v203, 4294901760
      %1028 = vmatprep.subr.mxu0 %v1027
      %v1029 = vand.u32 %v202, 4294901760
      %1030 = vmatpush2.msra.mxu0 %v1029
      %v1031 = vand.u32 %v201, 4294901760
      %1032 = vmatprep.subr.mxu0 %v1031
      %v1033 = vand.u32 %v200, 4294901760
      %1034 = vmatpush2.msra.mxu0 %v1033
      %v1035 = vand.u32 %v199, 4294901760
      %1036 = vmatprep.subr.mxu0 %v1035
      %v1037 = vand.u32 %v198, 4294901760
      %1038 = vmatpush2.msra.mxu0 %v1037
      %v1039 = vand.u32 %v197, 4294901760
      %1040 = vmatprep.subr.mxu0 %v1039
      %v1041 = vand.u32 %v196, 4294901760
      %1042 = vmatpush2.msra.mxu0 %v1041
      %v1043 = vand.u32 %v195, 4294901760
      %1044 = vmatprep.subr.mxu0 %v1043
      %v1045 = vand.u32 %v194, 4294901760
      %1046 = vmatpush2.msra.mxu0 %v1045
      %v1047 = vand.u32 %v193, 4294901760
      %1048 = vmatprep.subr.mxu0 %v1047
      %v1049 = vand.u32 %v192, 4294901760
      %1050 = vmatpush2.msra.mxu0 %v1049
      %v1051 = vand.u32 %v191, 4294901760
      %1052 = vmatprep.subr.mxu0 %v1051
      %v1053 = vand.u32 %v190, 4294901760
      %1054 = vmatpush2.msra.mxu0 %v1053
      %v1055 = vand.u32 %v189, 4294901760
      %1056 = vmatprep.subr.mxu0 %v1055
      %v1057 = vand.u32 %v188, 4294901760
      %1058 = vmatpush2.msra.mxu0 %v1057
      %v1059 = vand.u32 %v187, 4294901760
      %1060 = vmatprep.subr.mxu0 %v1059
      %v1061 = vand.u32 %v186, 4294901760
      %1062 = vmatpush2.msra.mxu0 %v1061
      %v1063 = vand.u32 %v185, 4294901760
      %1064 = vmatprep.subr.mxu0 %v1063
      %v1065 = vand.u32 %v184, 4294901760
      %1066 = vmatpush2.msra.mxu0 %v1065
      %v1067 = vand.u32 %v183, 4294901760
      %1068 = vmatprep.subr.mxu0 %v1067
      %v1069 = vand.u32 %v182, 4294901760
      %1070 = vmatpush2.msra.mxu0 %v1069
      %v1071 = vand.u32 %v181, 4294901760
      %1072 = vmatprep.subr.mxu0 %v1071
      %v1073 = vand.u32 %v180, 4294901760
      %1074 = vmatpush2.msra.mxu0 %v1073
      %v1075 = vand.u32 %v179, 4294901760
      %1076 = vmatprep.subr.mxu0 %v1075
      %v1077 = vand.u32 %v178, 4294901760
      %1078 = vmatpush2.msra.mxu0 %v1077
      %v1079 = vand.u32 %v145, 4294901760
      %v1080 = vsub.f32 %v145, %v1079
      %v1081 = vand.u32 %v1080, 4294901760
      %1082 = vmatprep.mubr.f32.mxu0 %v1081
      %v1083 = vand.u32 %v144, 4294901760
      %v1084 = vsub.f32 %v144, %v1083
      %v1085 = vand.u32 %v1084, 4294901760
      %1086 = vmatmul.mubr.f32.gmra.mxu0 %v1085
      %v1087 = vpop.f32.mrf.mxu0
      %v1088 = vadd.f32 %v947, %v1087
      %v1089 = vpop.f32.mrf.mxu0
      %v1090 = vadd.f32 %v949, %v1089
      %1091 = vdwg.mxu0
      %v1092 = vand.u32 %v177, 4294901760
      %v1093 = vsub.f32 %v177, %v1092
      %v1094 = vand.u32 %v1093, 4294901760
      %1095 = vmatprep.subr.mxu0 %v1094
      %v1096 = vand.u32 %v176, 4294901760
      %v1097 = vsub.f32 %v176, %v1096
      %v1098 = vand.u32 %v1097, 4294901760
      %1099 = vmatpush1.msra.mxu0 %v1098
      %v1100 = vand.u32 %v175, 4294901760
      %v1101 = vsub.f32 %v175, %v1100
      %v1102 = vand.u32 %v1101, 4294901760
      %1103 = vmatprep.subr.mxu0 %v1102
      %v1104 = vand.u32 %v174, 4294901760
      %v1105 = vsub.f32 %v174, %v1104
      %v1106 = vand.u32 %v1105, 4294901760
      %1107 = vmatpush1.msra.mxu0 %v1106
      %v1108 = vand.u32 %v173, 4294901760
      %v1109 = vsub.f32 %v173, %v1108
      %v1110 = vand.u32 %v1109, 4294901760
      %1111 = vmatprep.subr.mxu0 %v1110
      %v1112 = vand.u32 %v172, 4294901760
      %v1113 = vsub.f32 %v172, %v1112
      %v1114 = vand.u32 %v1113, 4294901760
      %1115 = vmatpush1.msra.mxu0 %v1114
      %v1116 = vand.u32 %v171, 4294901760
      %v1117 = vsub.f32 %v171, %v1116
      %v1118 = vand.u32 %v1117, 4294901760
      %1119 = vmatprep.subr.mxu0 %v1118
      %v1120 = vand.u32 %v170, 4294901760
      %v1121 = vsub.f32 %v170, %v1120
      %v1122 = vand.u32 %v1121, 4294901760
      %1123 = vmatpush1.msra.mxu0 %v1122
      %v1124 = vand.u32 %v169, 4294901760
      %v1125 = vsub.f32 %v169, %v1124
      %v1126 = vand.u32 %v1125, 4294901760
      %1127 = vmatprep.subr.mxu0 %v1126
      %v1128 = vand.u32 %v168, 4294901760
      %v1129 = vsub.f32 %v168, %v1128
      %v1130 = vand.u32 %v1129, 4294901760
      %1131 = vmatpush1.msra.mxu0 %v1130
      %v1132 = vand.u32 %v167, 4294901760
      %v1133 = vsub.f32 %v167, %v1132
      %v1134 = vand.u32 %v1133, 4294901760
      %1135 = vmatprep.subr.mxu0 %v1134
      %v1136 = vand.u32 %v166, 4294901760
      %v1137 = vsub.f32 %v166, %v1136
      %v1138 = vand.u32 %v1137, 4294901760
      %1139 = vmatpush1.msra.mxu0 %v1138
      %v1140 = vand.u32 %v165, 4294901760
      %v1141 = vsub.f32 %v165, %v1140
      %v1142 = vand.u32 %v1141, 4294901760
      %1143 = vmatprep.subr.mxu0 %v1142
      %v1144 = vand.u32 %v164, 4294901760
      %v1145 = vsub.f32 %v164, %v1144
      %v1146 = vand.u32 %v1145, 4294901760
      %1147 = vmatpush1.msra.mxu0 %v1146
      %v1148 = vand.u32 %v163, 4294901760
      %v1149 = vsub.f32 %v163, %v1148
      %v1150 = vand.u32 %v1149, 4294901760
      %1151 = vmatprep.subr.mxu0 %v1150
      %v1152 = vand.u32 %v162, 4294901760
      %v1153 = vsub.f32 %v162, %v1152
      %v1154 = vand.u32 %v1153, 4294901760
      %1155 = vmatpush1.msra.mxu0 %v1154
      %v1156 = vand.u32 %v161, 4294901760
      %v1157 = vsub.f32 %v161, %v1156
      %v1158 = vand.u32 %v1157, 4294901760
      %1159 = vmatprep.subr.mxu0 %v1158
      %v1160 = vand.u32 %v160, 4294901760
      %v1161 = vsub.f32 %v160, %v1160
      %v1162 = vand.u32 %v1161, 4294901760
      %1163 = vmatpush1.msra.mxu0 %v1162
      %v1164 = vand.u32 %v159, 4294901760
      %v1165 = vsub.f32 %v159, %v1164
      %v1166 = vand.u32 %v1165, 4294901760
      %1167 = vmatprep.subr.mxu0 %v1166
      %v1168 = vand.u32 %v158, 4294901760
      %v1169 = vsub.f32 %v158, %v1168
      %v1170 = vand.u32 %v1169, 4294901760
      %1171 = vmatpush1.msra.mxu0 %v1170
      %v1172 = vand.u32 %v157, 4294901760
      %v1173 = vsub.f32 %v157, %v1172
      %v1174 = vand.u32 %v1173, 4294901760
      %1175 = vmatprep.subr.mxu0 %v1174
      %v1176 = vand.u32 %v156, 4294901760
      %v1177 = vsub.f32 %v156, %v1176
      %v1178 = vand.u32 %v1177, 4294901760
      %1179 = vmatpush1.msra.mxu0 %v1178
      %v1180 = vand.u32 %v155, 4294901760
      %v1181 = vsub.f32 %v155, %v1180
      %v1182 = vand.u32 %v1181, 4294901760
      %1183 = vmatprep.subr.mxu0 %v1182
      %v1184 = vand.u32 %v154, 4294901760
      %v1185 = vsub.f32 %v154, %v1184
      %v1186 = vand.u32 %v1185, 4294901760
      %1187 = vmatpush1.msra.mxu0 %v1186
      %v1188 = vand.u32 %v153, 4294901760
      %v1189 = vsub.f32 %v153, %v1188
      %v1190 = vand.u32 %v1189, 4294901760
      %1191 = vmatprep.subr.mxu0 %v1190
      %v1192 = vand.u32 %v152, 4294901760
      %v1193 = vsub.f32 %v152, %v1192
      %v1194 = vand.u32 %v1193, 4294901760
      %1195 = vmatpush1.msra.mxu0 %v1194
      %v1196 = vand.u32 %v151, 4294901760
      %v1197 = vsub.f32 %v151, %v1196
      %v1198 = vand.u32 %v1197, 4294901760
      %1199 = vmatprep.subr.mxu0 %v1198
      %v1200 = vand.u32 %v150, 4294901760
      %v1201 = vsub.f32 %v150, %v1200
      %v1202 = vand.u32 %v1201, 4294901760
      %1203 = vmatpush1.msra.mxu0 %v1202
      %v1204 = vand.u32 %v149, 4294901760
      %v1205 = vsub.f32 %v149, %v1204
      %v1206 = vand.u32 %v1205, 4294901760
      %1207 = vmatprep.subr.mxu0 %v1206
      %v1208 = vand.u32 %v148, 4294901760
      %v1209 = vsub.f32 %v148, %v1208
      %v1210 = vand.u32 %v1209, 4294901760
      %1211 = vmatpush1.msra.mxu0 %v1210
      %v1212 = vand.u32 %v147, 4294901760
      %v1213 = vsub.f32 %v147, %v1212
      %v1214 = vand.u32 %v1213, 4294901760
      %1215 = vmatprep.subr.mxu0 %v1214
      %v1216 = vand.u32 %v146, 4294901760
      %v1217 = vsub.f32 %v146, %v1216
      %v1218 = vand.u32 %v1217, 4294901760
      %1219 = vmatpush1.msra.mxu0 %v1218
      %v1220 = vand.u32 %v209, 4294901760
      %v1221 = vsub.f32 %v209, %v1220
      %v1222 = vand.u32 %v1221, 4294901760
      %1223 = vmatprep.subr.mxu0 %v1222
      %v1224 = vand.u32 %v208, 4294901760
      %v1225 = vsub.f32 %v208, %v1224
      %v1226 = vand.u32 %v1225, 4294901760
      %1227 = vmatpush2.msra.mxu0 %v1226
      %v1228 = vand.u32 %v207, 4294901760
      %v1229 = vsub.f32 %v207, %v1228
      %v1230 = vand.u32 %v1229, 4294901760
      %1231 = vmatprep.subr.mxu0 %v1230
      %v1232 = vand.u32 %v206, 4294901760
      %v1233 = vsub.f32 %v206, %v1232
      %v1234 = vand.u32 %v1233, 4294901760
      %1235 = vmatpush2.msra.mxu0 %v1234
      %v1236 = vand.u32 %v205, 4294901760
      %v1237 = vsub.f32 %v205, %v1236
      %v1238 = vand.u32 %v1237, 4294901760
      %1239 = vmatprep.subr.mxu0 %v1238
      %v1240 = vand.u32 %v204, 4294901760
      %v1241 = vsub.f32 %v204, %v1240
      %v1242 = vand.u32 %v1241, 4294901760
      %1243 = vmatpush2.msra.mxu0 %v1242
      %v1244 = vand.u32 %v203, 4294901760
      %v1245 = vsub.f32 %v203, %v1244
      %v1246 = vand.u32 %v1245, 4294901760
      %1247 = vmatprep.subr.mxu0 %v1246
      %v1248 = vand.u32 %v202, 4294901760
      %v1249 = vsub.f32 %v202, %v1248
      %v1250 = vand.u32 %v1249, 4294901760
      %1251 = vmatpush2.msra.mxu0 %v1250
      %v1252 = vand.u32 %v201, 4294901760
      %v1253 = vsub.f32 %v201, %v1252
      %v1254 = vand.u32 %v1253, 4294901760
      %1255 = vmatprep.subr.mxu0 %v1254
      %v1256 = vand.u32 %v200, 4294901760
      %v1257 = vsub.f32 %v200, %v1256
      %v1258 = vand.u32 %v1257, 4294901760
      %1259 = vmatpush2.msra.mxu0 %v1258
      %v1260 = vand.u32 %v199, 4294901760
      %v1261 = vsub.f32 %v199, %v1260
      %v1262 = vand.u32 %v1261, 4294901760
      %1263 = vmatprep.subr.mxu0 %v1262
      %v1264 = vand.u32 %v198, 4294901760
      %v1265 = vsub.f32 %v198, %v1264
      %v1266 = vand.u32 %v1265, 4294901760
      %1267 = vmatpush2.msra.mxu0 %v1266
      %v1268 = vand.u32 %v197, 4294901760
      %v1269 = vsub.f32 %v197, %v1268
      %v1270 = vand.u32 %v1269, 4294901760
      %1271 = vmatprep.subr.mxu0 %v1270
      %v1272 = vand.u32 %v196, 4294901760
      %v1273 = vsub.f32 %v196, %v1272
      %v1274 = vand.u32 %v1273, 4294901760
      %1275 = vmatpush2.msra.mxu0 %v1274
      %v1276 = vand.u32 %v195, 4294901760
      %v1277 = vsub.f32 %v195, %v1276
      %v1278 = vand.u32 %v1277, 4294901760
      %1279 = vmatprep.subr.mxu0 %v1278
      %v1280 = vand.u32 %v194, 4294901760
      %v1281 = vsub.f32 %v194, %v1280
      %v1282 = vand.u32 %v1281, 4294901760
      %1283 = vmatpush2.msra.mxu0 %v1282
      %v1284 = vand.u32 %v193, 4294901760
      %v1285 = vsub.f32 %v193, %v1284
      %v1286 = vand.u32 %v1285, 4294901760
      %1287 = vmatprep.subr.mxu0 %v1286
      %v1288 = vand.u32 %v192, 4294901760
      %v1289 = vsub.f32 %v192, %v1288
      %v1290 = vand.u32 %v1289, 4294901760
      %1291 = vmatpush2.msra.mxu0 %v1290
      %v1292 = vand.u32 %v191, 4294901760
      %v1293 = vsub.f32 %v191, %v1292
      %v1294 = vand.u32 %v1293, 4294901760
      %1295 = vmatprep.subr.mxu0 %v1294
      %v1296 = vand.u32 %v190, 4294901760
      %v1297 = vsub.f32 %v190, %v1296
      %v1298 = vand.u32 %v1297, 4294901760
      %1299 = vmatpush2.msra.mxu0 %v1298
      %v1300 = vand.u32 %v189, 4294901760
      %v1301 = vsub.f32 %v189, %v1300
      %v1302 = vand.u32 %v1301, 4294901760
      %1303 = vmatprep.subr.mxu0 %v1302
      %v1304 = vand.u32 %v188, 4294901760
      %v1305 = vsub.f32 %v188, %v1304
      %v1306 = vand.u32 %v1305, 4294901760
      %1307 = vmatpush2.msra.mxu0 %v1306
      %v1308 = vand.u32 %v187, 4294901760
      %v1309 = vsub.f32 %v187, %v1308
      %v1310 = vand.u32 %v1309, 4294901760
      %1311 = vmatprep.subr.mxu0 %v1310
      %v1312 = vand.u32 %v186, 4294901760
      %v1313 = vsub.f32 %v186, %v1312
      %v1314 = vand.u32 %v1313, 4294901760
      %1315 = vmatpush2.msra.mxu0 %v1314
      %v1316 = vand.u32 %v185, 4294901760
      %v1317 = vsub.f32 %v185, %v1316
      %v1318 = vand.u32 %v1317, 4294901760
      %1319 = vmatprep.subr.mxu0 %v1318
      %v1320 = vand.u32 %v184, 4294901760
      %v1321 = vsub.f32 %v184, %v1320
      %v1322 = vand.u32 %v1321, 4294901760
      %1323 = vmatpush2.msra.mxu0 %v1322
      %v1324 = vand.u32 %v183, 4294901760
      %v1325 = vsub.f32 %v183, %v1324
      %v1326 = vand.u32 %v1325, 4294901760
      %1327 = vmatprep.subr.mxu0 %v1326
      %v1328 = vand.u32 %v182, 4294901760
      %v1329 = vsub.f32 %v182, %v1328
      %v1330 = vand.u32 %v1329, 4294901760
      %1331 = vmatpush2.msra.mxu0 %v1330
      %v1332 = vand.u32 %v181, 4294901760
      %v1333 = vsub.f32 %v181, %v1332
      %v1334 = vand.u32 %v1333, 4294901760
      %1335 = vmatprep.subr.mxu0 %v1334
      %v1336 = vand.u32 %v180, 4294901760
      %v1337 = vsub.f32 %v180, %v1336
      %v1338 = vand.u32 %v1337, 4294901760
      %1339 = vmatpush2.msra.mxu0 %v1338
      %v1340 = vand.u32 %v179, 4294901760
      %v1341 = vsub.f32 %v179, %v1340
      %v1342 = vand.u32 %v1341, 4294901760
      %1343 = vmatprep.subr.mxu0 %v1342
      %v1344 = vand.u32 %v178, 4294901760
      %v1345 = vsub.f32 %v178, %v1344
      %v1346 = vand.u32 %v1345, 4294901760
      %1347 = vmatpush2.msra.mxu0 %v1346
      %v1348 = vand.u32 %v145, 4294901760
      %1349 = vmatprep.mubr.f32.mxu0 %v1348
      %v1350 = vand.u32 %v144, 4294901760
      %1351 = vmatmul.mubr.f32.gmra.mxu0 %v1350
      %v1352 = vpop.f32.mrf.mxu0
      %v1353 = vadd.f32 %v1088, %v1352
      %v1354 = vpop.f32.mrf.mxu0
      %v1355 = vadd.f32 %v1090, %v1354
      %1356 = vdwg.mxu0
      %v1357 = vand.u32 %v177, 4294901760
      %1358 = vmatprep.subr.mxu0 %v1357
      %v1359 = vand.u32 %v176, 4294901760
      %1360 = vmatpush1.msra.mxu0 %v1359
      %v1361 = vand.u32 %v175, 4294901760
      %1362 = vmatprep.subr.mxu0 %v1361
      %v1363 = vand.u32 %v174, 4294901760
      %1364 = vmatpush1.msra.mxu0 %v1363
      %v1365 = vand.u32 %v173, 4294901760
      %1366 = vmatprep.subr.mxu0 %v1365
      %v1367 = vand.u32 %v172, 4294901760
      %1368 = vmatpush1.msra.mxu0 %v1367
      %v1369 = vand.u32 %v171, 4294901760
      %1370 = vmatprep.subr.mxu0 %v1369
      %v1371 = vand.u32 %v170, 4294901760
      %1372 = vmatpush1.msra.mxu0 %v1371
      %v1373 = vand.u32 %v169, 4294901760
      %1374 = vmatprep.subr.mxu0 %v1373
      %v1375 = vand.u32 %v168, 4294901760
      %1376 = vmatpush1.msra.mxu0 %v1375
      %v1377 = vand.u32 %v167, 4294901760
      %1378 = vmatprep.subr.mxu0 %v1377
      %v1379 = vand.u32 %v166, 4294901760
      %1380 = vmatpush1.msra.mxu0 %v1379
      %v1381 = vand.u32 %v165, 4294901760
      %1382 = vmatprep.subr.mxu0 %v1381
      %v1383 = vand.u32 %v164, 4294901760
      %1384 = vmatpush1.msra.mxu0 %v1383
      %v1385 = vand.u32 %v163, 4294901760
      %1386 = vmatprep.subr.mxu0 %v1385
      %v1387 = vand.u32 %v162, 4294901760
      %1388 = vmatpush1.msra.mxu0 %v1387
      %v1389 = vand.u32 %v161, 4294901760
      %1390 = vmatprep.subr.mxu0 %v1389
      %v1391 = vand.u32 %v160, 4294901760
      %1392 = vmatpush1.msra.mxu0 %v1391
      %v1393 = vand.u32 %v159, 4294901760
      %1394 = vmatprep.subr.mxu0 %v1393
      %v1395 = vand.u32 %v158, 4294901760
      %1396 = vmatpush1.msra.mxu0 %v1395
      %v1397 = vand.u32 %v157, 4294901760
      %1398 = vmatprep.subr.mxu0 %v1397
      %v1399 = vand.u32 %v156, 4294901760
      %1400 = vmatpush1.msra.mxu0 %v1399
      %v1401 = vand.u32 %v155, 4294901760
      %1402 = vmatprep.subr.mxu0 %v1401
      %v1403 = vand.u32 %v154, 4294901760
      %1404 = vmatpush1.msra.mxu0 %v1403
      %v1405 = vand.u32 %v153, 4294901760
      %1406 = vmatprep.subr.mxu0 %v1405
      %v1407 = vand.u32 %v152, 4294901760
      %1408 = vmatpush1.msra.mxu0 %v1407
      %v1409 = vand.u32 %v151, 4294901760
      %1410 = vmatprep.subr.mxu0 %v1409
      %v1411 = vand.u32 %v150, 4294901760
      %1412 = vmatpush1.msra.mxu0 %v1411
      %v1413 = vand.u32 %v149, 4294901760
      %1414 = vmatprep.subr.mxu0 %v1413
      %v1415 = vand.u32 %v148, 4294901760
      %1416 = vmatpush1.msra.mxu0 %v1415
      %v1417 = vand.u32 %v147, 4294901760
      %1418 = vmatprep.subr.mxu0 %v1417
      %v1419 = vand.u32 %v146, 4294901760
      %1420 = vmatpush1.msra.mxu0 %v1419
      %v1421 = vand.u32 %v209, 4294901760
      %1422 = vmatprep.subr.mxu0 %v1421
      %v1423 = vand.u32 %v208, 4294901760
      %1424 = vmatpush2.msra.mxu0 %v1423
      %v1425 = vand.u32 %v207, 4294901760
      %1426 = vmatprep.subr.mxu0 %v1425
      %v1427 = vand.u32 %v206, 4294901760
      %1428 = vmatpush2.msra.mxu0 %v1427
      %v1429 = vand.u32 %v205, 4294901760
      %1430 = vmatprep.subr.mxu0 %v1429
      %v1431 = vand.u32 %v204, 4294901760
      %1432 = vmatpush2.msra.mxu0 %v1431
      %v1433 = vand.u32 %v203, 4294901760
      %1434 = vmatprep.subr.mxu0 %v1433
      %v1435 = vand.u32 %v202, 4294901760
      %1436 = vmatpush2.msra.mxu0 %v1435
      %v1437 = vand.u32 %v201, 4294901760
      %1438 = vmatprep.subr.mxu0 %v1437
      %v1439 = vand.u32 %v200, 4294901760
      %1440 = vmatpush2.msra.mxu0 %v1439
      %v1441 = vand.u32 %v199, 4294901760
      %1442 = vmatprep.subr.mxu0 %v1441
      %v1443 = vand.u32 %v198, 4294901760
      %1444 = vmatpush2.msra.mxu0 %v1443
      %v1445 = vand.u32 %v197, 4294901760
      %1446 = vmatprep.subr.mxu0 %v1445
      %v1447 = vand.u32 %v196, 4294901760
      %1448 = vmatpush2.msra.mxu0 %v1447
      %v1449 = vand.u32 %v195, 4294901760
      %1450 = vmatprep.subr.mxu0 %v1449
      %v1451 = vand.u32 %v194, 4294901760
      %1452 = vmatpush2.msra.mxu0 %v1451
      %v1453 = vand.u32 %v193, 4294901760
      %1454 = vmatprep.subr.mxu0 %v1453
      %v1455 = vand.u32 %v192, 4294901760
      %1456 = vmatpush2.msra.mxu0 %v1455
      %v1457 = vand.u32 %v191, 4294901760
      %1458 = vmatprep.subr.mxu0 %v1457
      %v1459 = vand.u32 %v190, 4294901760
      %1460 = vmatpush2.msra.mxu0 %v1459
      %v1461 = vand.u32 %v189, 4294901760
      %1462 = vmatprep.subr.mxu0 %v1461
      %v1463 = vand.u32 %v188, 4294901760
      %1464 = vmatpush2.msra.mxu0 %v1463
      %v1465 = vand.u32 %v187, 4294901760
      %1466 = vmatprep.subr.mxu0 %v1465
      %v1467 = vand.u32 %v186, 4294901760
      %1468 = vmatpush2.msra.mxu0 %v1467
      %v1469 = vand.u32 %v185, 4294901760
      %1470 = vmatprep.subr.mxu0 %v1469
      %v1471 = vand.u32 %v184, 4294901760
      %1472 = vmatpush2.msra.mxu0 %v1471
      %v1473 = vand.u32 %v183, 4294901760
      %1474 = vmatprep.subr.mxu0 %v1473
      %v1475 = vand.u32 %v182, 4294901760
      %1476 = vmatpush2.msra.mxu0 %v1475
      %v1477 = vand.u32 %v181, 4294901760
      %1478 = vmatprep.subr.mxu0 %v1477
      %v1479 = vand.u32 %v180, 4294901760
      %1480 = vmatpush2.msra.mxu0 %v1479
      %v1481 = vand.u32 %v179, 4294901760
      %1482 = vmatprep.subr.mxu0 %v1481
      %v1483 = vand.u32 %v178, 4294901760
      %1484 = vmatpush2.msra.mxu0 %v1483
      %v1485 = vand.u32 %v145, 4294901760
      %1486 = vmatprep.mubr.f32.mxu0 %v1485
      %v1487 = vand.u32 %v144, 4294901760
      %1488 = vmatmul.mubr.f32.gmra.mxu0 %v1487
      %v1489 = vpop.f32.mrf.mxu0
      %v1490 = vadd.f32 %v1353, %v1489
      %v1491 = vpop.f32.mrf.mxu0
      %v1492 = vadd.f32 %v1355, %v1491
      %1493 = vdwg.mxu0
      %1494 = vst [vmem:[%s143] sm:$0xff] %v1490
      %1495 = vst [vmem:[%s143 + $0x8] sm:$0xff] %v1492
      %p1496 = scmp.lt.s32.totalorder %s13, 1
      %s1497 = scalar_select %p1496, %s13, 1
      %s1498 = smul.addr %s1497, 2
      %s1499 = smul.addr %s1498, 8
      %s1500 = scalar_lea.vmem %s2, %s1499
      // Predicated region
      $region29: #{pixelcnn_forward_pallas.1} parent=27 // pred_check
        %p1501 = pneg %p78
      $region30: #{pixelcnn_forward_pallas.1} parent=27 // pred_check_branch
        %1503 = sbr.rel (%p1501) target = $region32
      $region31: #{pixelcnn_forward_pallas.1} parent=27 // pred_region
        _
      $region32: #{pixelcnn_forward_pallas.1} parent=27 // pred_fallthru
        _
    $region28: #{pixelcnn_forward_pallas.1} parent=5 // pred_fallthru
      _
    %p1504 = scmp.le.s32.totalorder 2, %s8
    // Predicated region
    $region33: #{pixelcnn_forward_pallas.1} parent=5 // pred_check
      %p1505 = pneg %p1504
    $region34: #{pixelcnn_forward_pallas.1} parent=5 // pred_check_branch
      %1507 = sbr.rel (%p1505) target = $region36
    $region35: #{pixelcnn_forward_pallas.1} parent=5 // pred_region
      %s1508 = ssub.s32 %s8, 2
      // Predicated region
      $region37: #{pixelcnn_forward_pallas.1} parent=35 // pred_check
        %p1509 = pneg %p84
      $region38: #{pixelcnn_forward_pallas.1} parent=35 // pred_check_branch
        %1511 = sbr.rel (%p1509) target = $region40
      $region39: #{pixelcnn_forward_pallas.1} parent=35 // pred_region
        %p1512 = scmp.lt.s32.totalorder %s14, 1
        %s1513 = scalar_select %p1512, %s14, 1
        %s1514 = smul.addr %s1513, 2
        %s1515 = smul.addr %s1514, 8
        %s1516 = scalar_lea.vmem %s2, %s1515
      $region40: #{pixelcnn_forward_pallas.1} parent=35 // pred_fallthru
        _
    $region36: #{pixelcnn_forward_pallas.1} parent=5 // pred_fallthru
      _
  $region6: #{pixelcnn_forward_pallas.1} parent=0 // loop_footer
    %s12 = sadd.s32 1, %s8
  $region7: #{pixelcnn_forward_pallas.1} parent=0 // loop_footer_branch
    %7 = sbr.rel target = $region3
  $region8: #{pixelcnn_forward_pallas.1} parent=0 // loop_exit
    _

</llo_original>
